<compile_context>
chip_gen: v5e
topology: v5e:2x2
jax: 0.10.0
libtpu: 0.0.40
codegen_flags: <defaults>
</compile_context>

<pallas_src>
import math
import jax
import jax.numpy as jnp
from jax import lax
from jax.experimental import pallas as pl
from jax.experimental.pallas import tpu as pltpu

# ----------------------------- settings ---------------------------------------
BLOCK_SIZE = 16          # T  (sequence / block size)
NUM_EMBED  = 64          # E
NUM_LAYERS = 2
NUM_HEADS  = 4
HEAD_DIM   = NUM_EMBED // NUM_HEADS
INPUT_DIM  = 1           # required so the MSE-loss view in the reference is valid
LN_EPS     = 1e-5
NEG_INF    = -1e30

PARAM_NAMES = [
    "w_st", "b_st", "pos",
    "ln1g", "ln1b", "w_qkv", "b_qkv", "w_proj", "b_proj",
    "ln2g", "ln2b", "w_fc", "b_fc", "w_fc2", "b_fc2",
    "lnng", "lnnb", "w_fin",
]


def _ln(v, g, b):
    mu = jnp.mean(v, axis=-1, keepdims=True)
    var = jnp.mean((v - mu) ** 2, axis=-1, keepdims=True)
    return (v - mu) * lax.rsqrt(var + LN_EPS) * g + b


def _gelu(m):
    c = math.sqrt(2.0 / math.pi)
    return 0.5 * m * (1.0 + jnp.tanh(c * (m + 0.044715 * m * m * m)))


def _bf16(a):
    return a.astype(jnp.bfloat16)


# ------------------------------- fused kernel ----------------------------------
def _make_kernel(bb, b_actual):
    """bb = windows per grid step; b_actual = true (unpadded) batch size."""
    T, E, H, hd = BLOCK_SIZE, NUM_EMBED, NUM_HEADS, HEAD_DIM
    M = bb * T
    scale = 1.0 / math.sqrt(hd)
    inv_n = 1.0 / float(b_actual * T)

    def kernel(x_ref, y_ref,
               w_st, b_st, pos,
               ln1g, ln1b, w_qkv, b_qkv, w_proj, b_proj,
               ln2g, ln2b, w_fc, b_fc, w_fc2, b_fc2,
               lnng, lnnb, w_fin,
               preds_ref, loss_ref, sse_acc):
        step = pl.program_id(0)

        x = x_ref[...]                                                    # (bb, T) f32
        # stamps = Linear(block_size -> num_embed)(x), broadcast over T, add pos-emb
        stamps = jnp.dot(_bf16(x), _bf16(w_st[...]),
                         preferred_element_type=jnp.float32) + b_st[...]  # (bb, E)
        bl_in = (stamps[:, None, :] + pos[...][None, :, :]).reshape(M, E)  # (bb*T, E)

        # ---- GPT-2 pre-norm residual block (only the last block matters) ----
        h1 = _ln(bl_in, ln1g[...], ln1b[...])
        qkv = jnp.dot(_bf16(h1), _bf16(w_qkv[...]),
                      preferred_element_type=jnp.float32) + b_qkv[...]     # (M, 3E)
        q = qkv[:, 0:E]
        k = qkv[:, E:2 * E]
        v = qkv[:, 2 * E:3 * E]

        # causal mask, hoisted: built once per kernel invocation
        rows = lax.broadcasted_iota(jnp.int32, (T, T), 0)
        cols = lax.broadcasted_iota(jnp.int32, (T, T), 1)
        causal = (cols <= rows)[None, :, :]                                # (1, T, T)

        wproj = _bf16(w_proj[...])                                         # (E, E)
        attn = jnp.zeros((M, E), jnp.float32)
        # Heads unrolled statically (H=4); each head is batched over the bb
        # windows with a single-batch-dim einsum.  The per-head concat is folded
        # into the output projection: attn = sum_h ctx_h @ Wproj[h*hd:(h+1)*hd].
        for hh in range(H):
            lo = hh * hd
            qh = _bf16(q[:, lo:lo + hd].reshape(bb, T, hd))
            kh = _bf16(k[:, lo:lo + hd].reshape(bb, T, hd))
            vh = _bf16(v[:, lo:lo + hd].reshape(bb, T, hd))
            s = jnp.einsum("bqd,bkd->bqk", qh, kh,
                           preferred_element_type=jnp.float32) * scale     # (bb,T,T)
            s = jnp.where(causal, s, NEG_INF)
            s = s - jnp.max(s, axis=-1, keepdims=True)
            e = jnp.exp(s)
            p = e * pl.reciprocal(jnp.sum(e, axis=-1, keepdims=True), approx=True)
            ctx = jnp.einsum("bqk,bkd->bqd", _bf16(p), vh,
                             preferred_element_type=jnp.float32)           # (bb,T,hd)
            attn = attn + jnp.dot(_bf16(ctx.reshape(M, hd)), wproj[lo:lo + hd, :],
                                  preferred_element_type=jnp.float32)
        x1 = bl_in + attn + b_proj[...]

        h2 = _ln(x1, ln2g[...], ln2b[...])
        mlp = jnp.dot(_bf16(h2), _bf16(w_fc[...]),
                      preferred_element_type=jnp.float32) + b_fc[...]      # (M, 4E)
        mlp = _gelu(mlp)
        mlp = jnp.dot(_bf16(mlp), _bf16(w_fc2[...]),
                      preferred_element_type=jnp.float32) + b_fc2[...]     # (M, E)
        r_out = x1 + mlp

        # final LayerNorm + projection to input_dim (== 1): elementwise multiply
        # + lane reduction and a lane-dense (bb, T) store instead of an
        # (M,64)@(64,1) MXU matmul with 1-wide masked stores.
        time_out = _ln(r_out, lnng[...], lnnb[...])                        # (M, E)
        weighted = (time_out * w_fin[...]).reshape(bb, T, E)               # (bb,T,E)
        preds = jnp.sum(weighted, axis=-1)                                 # (bb, T)
        preds_ref[...] = preds

        # ---- fused MSE: accumulate sum of squared errors across grid steps ----
        d = preds - y_ref[...]
        if b_actual % bb != 0:  # padded rows exist -> mask them out of the loss
            rowb = step * bb + lax.broadcasted_iota(jnp.int32, (bb, T), 0)
            d = jnp.where(rowb < b_actual, d, 0.0)
        sse = jnp.sum(jnp.sum(d * d, axis=1, keepdims=True), axis=0, keepdims=True)

        @pl.when(step == 0)
        def _():
            sse_acc[...] = jnp.zeros_like(sse_acc)

        sse_acc[...] += sse

        @pl.when(step == pl.num_programs(0) - 1)
        def _():
            loss_ref[...] = sse_acc[...] * inv_n

    return kernel


# --------------------------------- wrapper --------------------------------------
def timegpt_forward(x, y, params, block_windows=None):
    B, T = x.shape
    assert T == BLOCK_SIZE, f"Cannot forward more than the block size: {BLOCK_SIZE}"

    # Windows per grid step: flatten bb*T rows so the matmul M-dim reaches ~256,
    # keeping bb a multiple of 8 whenever the grid has more than one step.
    if block_windows is None:
        bb = B if B <= 16 else 16
    else:
        bb = block_windows
    nb = -(-B // bb)          # ceil(B / bb)
    B_pad = nb * bb

    x_p = x if B_pad == B else jnp.pad(x, ((0, B_pad - B), (0, 0)))
    y_arr = y if y is not None else jnp.zeros_like(x)
    y_p = y_arr if B_pad == B else jnp.pad(y_arr, ((0, B_pad - B), (0, 0)))

    args = [params[n] for n in PARAM_NAMES]
    data_spec = pl.BlockSpec((bb, T), lambda b: (b, 0))
    in_specs = [data_spec, data_spec]
    in_specs += [pl.BlockSpec(p.shape, lambda b: (0, 0)) for p in args]   # weights resident

    preds_pad, loss_arr = pl.pallas_call(
        _make_kernel(bb, B),
        out_shape=(jax.ShapeDtypeStruct((B_pad, T), jnp.float32),
                   jax.ShapeDtypeStruct((1, 1), jnp.float32)),
        grid=(nb,),
        in_specs=in_specs,
        out_specs=(pl.BlockSpec((bb, T), lambda b: (b, 0)),
                   pl.BlockSpec((1, 1), lambda b: (0, 0))),
        scratch_shapes=[pltpu.VMEM((1, 1), jnp.float32)],
        # "arbitrary" because the fused-loss accumulator (and its (1,1) output)
        # is carried across grid steps; for the typical B<=16 case nb==1 anyway.
        compiler_params=pltpu.CompilerParams(dimension_semantics=("arbitrary",)),
    )(x_p, y_p, *args)

    preds = preds_pad[:B].reshape(B, T, INPUT_DIM)
    loss = loss_arr[0, 0] if y is not None else None
    return loss, preds


# --------------------------------- init ------------------------------------------
def init_params(key):
    E, T = NUM_EMBED, BLOCK_SIZE
    std = 0.02
    res_std = std * (2 * NUM_LAYERS) ** (-0.5)   # residual-projection scaling (pars_init)
    ks = jax.random.split(key, 8)
    nrm = jax.random.normal
    # matmul weights stored pre-transposed vs. torch.nn.Linear ((in, out) so the
    # kernel does act @ W); w_fin kept in torch's natural (out, in) = (1, E) layout
    # because the kernel applies it as an elementwise multiply + lane reduce.
    return {
        "w_st":  std * nrm(ks[0], (T, E), jnp.float32),
        "b_st":  jnp.zeros((1, E), jnp.float32),
        "pos":   0.01 * nrm(ks[1], (T, E), jnp.float32),      # Embedding N(0, 0.01)
        "ln1g":  jnp.ones((1, E), jnp.float32),
        "ln1b":  jnp.zeros((1, E), jnp.float32),
        "w_qkv": std * nrm(ks[2], (E, 3 * E), jnp.float32),
        "b_qkv": jnp.zeros((1, 3 * E), jnp.float32),
        "w_proj": res_std * nrm(ks[3], (E, E), jnp.float32),  # TIME_GPT flag -> scaled
        "b_proj": jnp.zeros((1, E), jnp.float32),
        "ln2g":  jnp.ones((1, E), jnp.float32),
        "ln2b":  jnp.zeros((1, E), jnp.float32),
        "w_fc":  std * nrm(ks[4], (E, 4 * E), jnp.float32),
        "b_fc":  jnp.zeros((1, 4 * E), jnp.float32),
        "w_fc2": res_std * nrm(ks[5], (4 * E, E), jnp.float32),  # TIME_GPT flag -> scaled
        "b_fc2": jnp.zeros((1, E), jnp.float32),
        "lnng":  jnp.ones((1, E), jnp.float32),
        "lnnb":  jnp.zeros((1, E), jnp.float32),
        "w_fin": std * nrm(ks[6], (INPUT_DIM, E), jnp.float32),  # final Linear, no bias
    }


# --------------------------------- pure-JAX reference -----------------------------
def ref_forward(x, y, P):
    B, T = x.shape
    stamps = x @ P["w_st"] + P["b_st"]                         # (B, E)
    bl_in = stamps[:, None, :] + P["pos"][None, :, :]          # (B, T, E)

    def ln(v, g, b):
        mu = v.mean(-1, keepdims=True)
        var = ((v - mu) ** 2).mean(-1, keepdims=True)
        return (v - mu) / jnp.sqrt(var + LN_EPS) * g + b

    h = ln(bl_in, P["ln1g"], P["ln1b"])
    qkv = h @ P["w_qkv"] + P["b_qkv"]
    q, k, v = jnp.split(qkv, 3, axis=-1)

    def heads(t):
        return t.reshape(B, T, NUM_HEADS, HEAD_DIM).transpose(0, 2, 1, 3)

    qh, kh, vh = heads(q), heads(k), heads(v)
    att = jnp.einsum("bhtd,bhsd->bhts", qh, kh) / math.sqrt(HEAD_DIM)
    mask = jnp.tril(jnp.ones((T, T), bool))
    att = jnp.where(mask, att, NEG_INF)
    att = jax.nn.softmax(att, axis=-1)
    o = jnp.einsum("bhts,bhsd->bhtd", att, vh).transpose(0, 2, 1, 3).reshape(B, T, NUM_EMBED)
    o = o @ P["w_proj"] + P["b_proj"]
    x1 = bl_in + o
    h2 = ln(x1, P["ln2g"], P["ln2b"])
    m = h2 @ P["w_fc"] + P["b_fc"]
    m = 0.5 * m * (1.0 + jnp.tanh(math.sqrt(2.0 / math.pi) * (m + 0.044715 * m ** 3)))
    m = m @ P["w_fc2"] + P["b_fc2"]
    r_out = x1 + m
    time_out = ln(r_out, P["lnng"], P["lnnb"])
    preds = time_out @ P["w_fin"].T                            # (B, T, 1)
    loss = jnp.mean((preds.reshape(-1) - y.reshape(-1)) ** 2)
    return loss, preds


# ----------------------------------- main -----------------------------------------
if __name__ == "__main__":
    key = jax.random.PRNGKey(0)
    kx, ky, kp = jax.random.split(key, 3)
    B = 2
    x = jax.random.normal(kx, (B, BLOCK_SIZE), jnp.float32)
    y = jax.random.normal(ky, (B, BLOCK_SIZE), jnp.float32)
    params = init_params(kp)

    loss, preds = timegpt_forward(x, y, params)
    loss = jax.block_until_ready(loss)
    preds = jax.block_until_ready(preds)

    # sanity check against a pure-f32 JAX reference (loose tol: kernel uses bf16
    # MXU operands with f32 accumulation, f32 elementwise math)
    ref_loss, ref_preds = ref_forward(x, y, params)
    assert preds.shape == (B, BLOCK_SIZE, INPUT_DIM)
    assert jnp.allclose(preds, ref_preds, atol=2e-2, rtol=2e-2), \
        float(jnp.max(jnp.abs(preds - ref_preds)))
    assert jnp.allclose(loss, ref_loss, atol=2e-2, rtol=2e-2), (float(loss), float(ref_loss))

    print("KERNEL_OK")
</pallas_src>

<mosaic_0001>
module attributes {stable_mosaic.version = 11 : i64} {
  func.func @kernel(%arg0: i32, %arg1: memref<2x16xf32, #tpu.memory_space<vmem>>, %arg2: memref<2x16xf32, #tpu.memory_space<vmem>>, %arg3: memref<16x64xf32, #tpu.memory_space<vmem>>, %arg4: memref<1x64xf32, #tpu.memory_space<vmem>>, %arg5: memref<16x64xf32, #tpu.memory_space<vmem>>, %arg6: memref<1x64xf32, #tpu.memory_space<vmem>>, %arg7: memref<1x64xf32, #tpu.memory_space<vmem>>, %arg8: memref<64x192xf32, #tpu.memory_space<vmem>>, %arg9: memref<1x192xf32, #tpu.memory_space<vmem>>, %arg10: memref<64x64xf32, #tpu.memory_space<vmem>>, %arg11: memref<1x64xf32, #tpu.memory_space<vmem>>, %arg12: memref<1x64xf32, #tpu.memory_space<vmem>>, %arg13: memref<1x64xf32, #tpu.memory_space<vmem>>, %arg14: memref<64x256xf32, #tpu.memory_space<vmem>>, %arg15: memref<1x256xf32, #tpu.memory_space<vmem>>, %arg16: memref<256x64xf32, #tpu.memory_space<vmem>>, %arg17: memref<1x64xf32, #tpu.memory_space<vmem>>, %arg18: memref<1x64xf32, #tpu.memory_space<vmem>>, %arg19: memref<1x64xf32, #tpu.memory_space<vmem>>, %arg20: memref<1x64xf32, #tpu.memory_space<vmem>>, %arg21: memref<2x16xf32, #tpu.memory_space<vmem>>, %arg22: memref<1x1xf32, #tpu.memory_space<vmem>>, %arg23: memref<1x1xf32, #tpu.memory_space<vmem>>) attributes {dimension_semantics = [#tpu.dimension_semantics<arbitrary>], iteration_bounds = array<i64: 1>, scalar_prefetch = 0 : i64, scratch_operands = 1 : i64, tpu.core_type = #tpu.core_type<tc>, window_params = [{transform_indices = @transform_0, window_bounds = array<i64: 2, 16>}, {transform_indices = @transform_1, window_bounds = array<i64: 2, 16>}, {pipeline_mode = #tpu.pipeline_mode<synchronous>, transform_indices = @transform_2, window_bounds = array<i64: 16, 64>}, {pipeline_mode = #tpu.pipeline_mode<synchronous>, transform_indices = @transform_3, window_bounds = array<i64: 1, 64>}, {pipeline_mode = #tpu.pipeline_mode<synchronous>, transform_indices = @transform_4, window_bounds = array<i64: 16, 64>}, {pipeline_mode = #tpu.pipeline_mode<synchronous>, transform_indices = @transform_5, window_bounds = array<i64: 1, 64>}, {pipeline_mode = #tpu.pipeline_mode<synchronous>, transform_indices = @transform_6, window_bounds = array<i64: 1, 64>}, {pipeline_mode = #tpu.pipeline_mode<synchronous>, transform_indices = @transform_7, window_bounds = array<i64: 64, 192>}, {pipeline_mode = #tpu.pipeline_mode<synchronous>, transform_indices = @transform_8, window_bounds = array<i64: 1, 192>}, {pipeline_mode = #tpu.pipeline_mode<synchronous>, transform_indices = @transform_9, window_bounds = array<i64: 64, 64>}, {pipeline_mode = #tpu.pipeline_mode<synchronous>, transform_indices = @transform_10, window_bounds = array<i64: 1, 64>}, {pipeline_mode = #tpu.pipeline_mode<synchronous>, transform_indices = @transform_11, window_bounds = array<i64: 1, 64>}, {pipeline_mode = #tpu.pipeline_mode<synchronous>, transform_indices = @transform_12, window_bounds = array<i64: 1, 64>}, {pipeline_mode = #tpu.pipeline_mode<synchronous>, transform_indices = @transform_13, window_bounds = array<i64: 64, 256>}, {pipeline_mode = #tpu.pipeline_mode<synchronous>, transform_indices = @transform_14, window_bounds = array<i64: 1, 256>}, {pipeline_mode = #tpu.pipeline_mode<synchronous>, transform_indices = @transform_15, window_bounds = array<i64: 256, 64>}, {pipeline_mode = #tpu.pipeline_mode<synchronous>, transform_indices = @transform_16, window_bounds = array<i64: 1, 64>}, {pipeline_mode = #tpu.pipeline_mode<synchronous>, transform_indices = @transform_17, window_bounds = array<i64: 1, 64>}, {pipeline_mode = #tpu.pipeline_mode<synchronous>, transform_indices = @transform_18, window_bounds = array<i64: 1, 64>}, {pipeline_mode = #tpu.pipeline_mode<synchronous>, transform_indices = @transform_19, window_bounds = array<i64: 1, 64>}, {transform_indices = @transform_20, window_bounds = array<i64: 2, 16>}, {pipeline_mode = #tpu.pipeline_mode<synchronous>, transform_indices = @transform_21, window_bounds = array<i64: 1, 1>}]} {
    %c0 = arith.constant 0 : index
    %c0_0 = arith.constant 0 : index
    %0 = vector.load %arg1[%c0, %c0_0] : memref<2x16xf32, #tpu.memory_space<vmem>>, vector<2x16xf32>
    %1 = arith.truncf %0 : vector<2x16xf32> to vector<2x16xbf16>
    %c0_1 = arith.constant 0 : index
    %c0_2 = arith.constant 0 : index
    %2 = vector.load %arg3[%c0_1, %c0_2] : memref<16x64xf32, #tpu.memory_space<vmem>>, vector<16x64xf32>
    %3 = arith.truncf %2 : vector<16x64xf32> to vector<16x64xbf16>
    %cst = arith.constant dense<0.000000e+00> : vector<2x64xf32>
    %4 = tpu.matmul %1, %3, %cst {dimension_numbers = #tpu.dot_dimension_numbers<[1], [0], [0], [1], [0, 0, 1, 1], [], []>} : vector<2x16xbf16>, vector<16x64xbf16>, vector<2x64xf32> -> vector<2x64xf32>
    %c0_3 = arith.constant 0 : index
    %c0_4 = arith.constant 0 : index
    %5 = vector.load %arg4[%c0_3, %c0_4] : memref<1x64xf32, #tpu.memory_space<vmem>>, vector<1x64xf32>
    %6 = vector.broadcast %5 : vector<1x64xf32> to vector<2x64xf32>
    %7 = arith.addf %4, %6 : vector<2x64xf32>
    %8 = vector.shape_cast %7 : vector<2x64xf32> to vector<2x1x64xf32>
    %c0_5 = arith.constant 0 : index
    %c0_6 = arith.constant 0 : index
    %9 = vector.load %arg5[%c0_5, %c0_6] : memref<16x64xf32, #tpu.memory_space<vmem>>, vector<16x64xf32>
    %10 = vector.shape_cast %9 : vector<16x64xf32> to vector<1x16x64xf32>
    %11 = vector.broadcast %8 : vector<2x1x64xf32> to vector<2x16x64xf32>
    %12 = vector.broadcast %10 : vector<1x16x64xf32> to vector<2x16x64xf32>
    %13 = arith.addf %11, %12 : vector<2x16x64xf32>
    %14 = vector.shape_cast %13 : vector<2x16x64xf32> to vector<32x64xf32>
    %c0_7 = arith.constant 0 : index
    %c0_8 = arith.constant 0 : index
    %15 = vector.load %arg6[%c0_7, %c0_8] : memref<1x64xf32, #tpu.memory_space<vmem>>, vector<1x64xf32>
    %c0_9 = arith.constant 0 : index
    %c0_10 = arith.constant 0 : index
    %16 = vector.load %arg7[%c0_9, %c0_10] : memref<1x64xf32, #tpu.memory_space<vmem>>, vector<1x64xf32>
    %cst_11 = arith.constant dense<0.000000e+00> : vector<32xf32>
    %17 = vector.multi_reduction <add>, %14, %cst_11 [1] : vector<32x64xf32> to vector<32xf32>
    %18 = vector.shape_cast %17 : vector<32xf32> to vector<32x1xf32>
    %cst_12 = arith.constant 6.400000e+01 : f32
    %19 = vector.broadcast %cst_12 : f32 to vector<32x1xf32>
    %20 = arith.divf %18, %19 : vector<32x1xf32>
    %21 = vector.broadcast %20 : vector<32x1xf32> to vector<32x64xf32>
    %22 = arith.subf %14, %21 : vector<32x64xf32>
    %23 = arith.mulf %22, %22 : vector<32x64xf32>
    %cst_13 = arith.constant dense<0.000000e+00> : vector<32xf32>
    %24 = vector.multi_reduction <add>, %23, %cst_13 [1] : vector<32x64xf32> to vector<32xf32>
    %25 = vector.shape_cast %24 : vector<32xf32> to vector<32x1xf32>
    %cst_14 = arith.constant 6.400000e+01 : f32
    %26 = vector.broadcast %cst_14 : f32 to vector<32x1xf32>
    %27 = arith.divf %25, %26 : vector<32x1xf32>
    %28 = vector.broadcast %20 : vector<32x1xf32> to vector<32x64xf32>
    %29 = arith.subf %14, %28 : vector<32x64xf32>
    %cst_15 = arith.constant 9.99999974E-6 : f32
    %30 = vector.broadcast %cst_15 : f32 to vector<32x1xf32>
    %31 = arith.addf %27, %30 : vector<32x1xf32>
    %32 = math.rsqrt %31 : vector<32x1xf32>
    %33 = vector.broadcast %32 : vector<32x1xf32> to vector<32x64xf32>
    %34 = arith.mulf %29, %33 : vector<32x64xf32>
    %35 = vector.broadcast %15 : vector<1x64xf32> to vector<32x64xf32>
    %36 = arith.mulf %34, %35 : vector<32x64xf32>
    %37 = vector.broadcast %16 : vector<1x64xf32> to vector<32x64xf32>
    %38 = arith.addf %36, %37 : vector<32x64xf32>
    %39 = arith.truncf %38 : vector<32x64xf32> to vector<32x64xbf16>
    %c0_16 = arith.constant 0 : index
    %c0_17 = arith.constant 0 : index
    %40 = vector.load %arg8[%c0_16, %c0_17] : memref<64x192xf32, #tpu.memory_space<vmem>>, vector<64x192xf32>
    %41 = arith.truncf %40 : vector<64x192xf32> to vector<64x192xbf16>
    %cst_18 = arith.constant dense<0.000000e+00> : vector<32x192xf32>
    %42 = tpu.matmul %39, %41, %cst_18 {dimension_numbers = #tpu.dot_dimension_numbers<[1], [0], [0], [1], [0, 0, 1, 1], [], []>} : vector<32x64xbf16>, vector<64x192xbf16>, vector<32x192xf32> -> vector<32x192xf32>
    %c0_19 = arith.constant 0 : index
    %c0_20 = arith.constant 0 : index
    %43 = vector.load %arg9[%c0_19, %c0_20] : memref<1x192xf32, #tpu.memory_space<vmem>>, vector<1x192xf32>
    %44 = vector.broadcast %43 : vector<1x192xf32> to vector<32x192xf32>
    %45 = arith.addf %42, %44 : vector<32x192xf32>
    %46 = vector.extract_strided_slice %45 {offsets = [0, 0], sizes = [32, 64], strides = [1, 1]} : vector<32x192xf32> to vector<32x64xf32>
    %47 = vector.extract_strided_slice %45 {offsets = [0, 64], sizes = [32, 64], strides = [1, 1]} : vector<32x192xf32> to vector<32x64xf32>
    %48 = vector.extract_strided_slice %45 {offsets = [0, 128], sizes = [32, 64], strides = [1, 1]} : vector<32x192xf32> to vector<32x64xf32>
    %49 = tpu.iota {dimensions = array<i32: 0>} : vector<16x16xi32>
    %50 = tpu.iota {dimensions = array<i32: 1>} : vector<16x16xi32>
    %51 = arith.cmpi sle, %50, %49 : vector<16x16xi32>
    %52 = vector.shape_cast %51 : vector<16x16xi1> to vector<1x16x16xi1>
    %c0_21 = arith.constant 0 : index
    %c0_22 = arith.constant 0 : index
    %53 = vector.load %arg10[%c0_21, %c0_22] : memref<64x64xf32, #tpu.memory_space<vmem>>, vector<64x64xf32>
    %54 = arith.truncf %53 : vector<64x64xf32> to vector<64x64xbf16>
    %cst_23 = arith.constant 0.000000e+00 : f32
    %55 = vector.broadcast %cst_23 : f32 to vector<32x64xf32>
    %56 = vector.extract_strided_slice %46 {offsets = [0, 0], sizes = [32, 16], strides = [1, 1]} : vector<32x64xf32> to vector<32x16xf32>
    %57 = vector.shape_cast %56 : vector<32x16xf32> to vector<2x16x16xf32>
    %58 = arith.truncf %57 : vector<2x16x16xf32> to vector<2x16x16xbf16>
    %59 = vector.extract_strided_slice %47 {offsets = [0, 0], sizes = [32, 16], strides = [1, 1]} : vector<32x64xf32> to vector<32x16xf32>
    %60 = vector.shape_cast %59 : vector<32x16xf32> to vector<2x16x16xf32>
    %61 = arith.truncf %60 : vector<2x16x16xf32> to vector<2x16x16xbf16>
    %62 = vector.extract_strided_slice %48 {offsets = [0, 0], sizes = [32, 16], strides = [1, 1]} : vector<32x64xf32> to vector<32x16xf32>
    %63 = vector.shape_cast %62 : vector<32x16xf32> to vector<2x16x16xf32>
    %64 = arith.truncf %63 : vector<2x16x16xf32> to vector<2x16x16xbf16>
    "tpu.trace_start"() <{level = 10 : i32, message = "bqd,bkd->bqk"}> : () -> ()
    %cst_24 = arith.constant dense<0.000000e+00> : vector<2x16x16xf32>
    %65 = tpu.matmul %58, %61, %cst_24 {dimension_numbers = #tpu.dot_dimension_numbers<[2], [2], [1], [1], [0, 0, 0, 1, 1, 1], [0], [0]>} : vector<2x16x16xbf16>, vector<2x16x16xbf16>, vector<2x16x16xf32> -> vector<2x16x16xf32>
    "tpu.trace_stop"() : () -> ()
    %cst_25 = arith.constant 2.500000e-01 : f32
    %66 = vector.broadcast %cst_25 : f32 to vector<2x16x16xf32>
    %67 = arith.mulf %65, %66 : vector<2x16x16xf32>
    %cst_26 = arith.constant -1.000000e+30 : f32
    %68 = vector.shape_cast %52 : vector<1x16x16xi1> to vector<1x16x16xi1>
    %69 = vector.broadcast %68 : vector<1x16x16xi1> to vector<2x16x16xi1>
    %70 = vector.broadcast %cst_26 : f32 to vector<2x16x16xf32>
    %71 = arith.select %69, %67, %70 : vector<2x16x16xi1>, vector<2x16x16xf32>
    %cst_27 = arith.constant dense<0xFF800000> : vector<2x16xf32>
    %72 = vector.multi_reduction <maximumf>, %71, %cst_27 [2] : vector<2x16x16xf32> to vector<2x16xf32>
    %73 = vector.shape_cast %72 : vector<2x16xf32> to vector<2x16x1xf32>
    %74 = vector.broadcast %73 : vector<2x16x1xf32> to vector<2x16x16xf32>
    %75 = arith.subf %71, %74 : vector<2x16x16xf32>
    %76 = math.exp %75 : vector<2x16x16xf32>
    %cst_28 = arith.constant dense<0.000000e+00> : vector<2x16xf32>
    %77 = vector.multi_reduction <add>, %76, %cst_28 [2] : vector<2x16x16xf32> to vector<2x16xf32>
    %78 = vector.shape_cast %77 : vector<2x16xf32> to vector<2x16x1xf32>
    %79 = tpu.reciprocal %78 {approx = true} : vector<2x16x1xf32> -> vector<2x16x1xf32>
    %80 = vector.broadcast %79 : vector<2x16x1xf32> to vector<2x16x16xf32>
    %81 = arith.mulf %76, %80 : vector<2x16x16xf32>
    %82 = arith.truncf %81 : vector<2x16x16xf32> to vector<2x16x16xbf16>
    "tpu.trace_start"() <{level = 10 : i32, message = "bqk,bkd->bqd"}> : () -> ()
    %cst_29 = arith.constant dense<0.000000e+00> : vector<2x16x16xf32>
    %83 = tpu.matmul %82, %64, %cst_29 {dimension_numbers = #tpu.dot_dimension_numbers<[2], [1], [1], [2], [0, 0, 0, 1, 1, 2], [0], [0]>} : vector<2x16x16xbf16>, vector<2x16x16xbf16>, vector<2x16x16xf32> -> vector<2x16x16xf32>
    "tpu.trace_stop"() : () -> ()
    %84 = vector.shape_cast %83 : vector<2x16x16xf32> to vector<32x16xf32>
    %85 = arith.truncf %84 : vector<32x16xf32> to vector<32x16xbf16>
    %86 = vector.extract_strided_slice %54 {offsets = [0, 0], sizes = [16, 64], strides = [1, 1]} : vector<64x64xbf16> to vector<16x64xbf16>
    %cst_30 = arith.constant dense<0.000000e+00> : vector<32x64xf32>
    %87 = tpu.matmul %85, %86, %cst_30 {dimension_numbers = #tpu.dot_dimension_numbers<[1], [0], [0], [1], [0, 0, 1, 1], [], []>} : vector<32x16xbf16>, vector<16x64xbf16>, vector<32x64xf32> -> vector<32x64xf32>
    %88 = arith.addf %55, %87 : vector<32x64xf32>
    %89 = vector.extract_strided_slice %46 {offsets = [0, 16], sizes = [32, 16], strides = [1, 1]} : vector<32x64xf32> to vector<32x16xf32>
    %90 = vector.shape_cast %89 : vector<32x16xf32> to vector<2x16x16xf32>
    %91 = arith.truncf %90 : vector<2x16x16xf32> to vector<2x16x16xbf16>
    %92 = vector.extract_strided_slice %47 {offsets = [0, 16], sizes = [32, 16], strides = [1, 1]} : vector<32x64xf32> to vector<32x16xf32>
    %93 = vector.shape_cast %92 : vector<32x16xf32> to vector<2x16x16xf32>
    %94 = arith.truncf %93 : vector<2x16x16xf32> to vector<2x16x16xbf16>
    %95 = vector.extract_strided_slice %48 {offsets = [0, 16], sizes = [32, 16], strides = [1, 1]} : vector<32x64xf32> to vector<32x16xf32>
    %96 = vector.shape_cast %95 : vector<32x16xf32> to vector<2x16x16xf32>
    %97 = arith.truncf %96 : vector<2x16x16xf32> to vector<2x16x16xbf16>
    "tpu.trace_start"() <{level = 10 : i32, message = "bqd,bkd->bqk"}> : () -> ()
    %cst_31 = arith.constant dense<0.000000e+00> : vector<2x16x16xf32>
    %98 = tpu.matmul %91, %94, %cst_31 {dimension_numbers = #tpu.dot_dimension_numbers<[2], [2], [1], [1], [0, 0, 0, 1, 1, 1], [0], [0]>} : vector<2x16x16xbf16>, vector<2x16x16xbf16>, vector<2x16x16xf32> -> vector<2x16x16xf32>
    "tpu.trace_stop"() : () -> ()
    %cst_32 = arith.constant 2.500000e-01 : f32
    %99 = vector.broadcast %cst_32 : f32 to vector<2x16x16xf32>
    %100 = arith.mulf %98, %99 : vector<2x16x16xf32>
    %cst_33 = arith.constant -1.000000e+30 : f32
    %101 = vector.shape_cast %52 : vector<1x16x16xi1> to vector<1x16x16xi1>
    %102 = vector.broadcast %101 : vector<1x16x16xi1> to vector<2x16x16xi1>
    %103 = vector.broadcast %cst_33 : f32 to vector<2x16x16xf32>
    %104 = arith.select %102, %100, %103 : vector<2x16x16xi1>, vector<2x16x16xf32>
    %cst_34 = arith.constant dense<0xFF800000> : vector<2x16xf32>
    %105 = vector.multi_reduction <maximumf>, %104, %cst_34 [2] : vector<2x16x16xf32> to vector<2x16xf32>
    %106 = vector.shape_cast %105 : vector<2x16xf32> to vector<2x16x1xf32>
    %107 = vector.broadcast %106 : vector<2x16x1xf32> to vector<2x16x16xf32>
    %108 = arith.subf %104, %107 : vector<2x16x16xf32>
    %109 = math.exp %108 : vector<2x16x16xf32>
    %cst_35 = arith.constant dense<0.000000e+00> : vector<2x16xf32>
    %110 = vector.multi_reduction <add>, %109, %cst_35 [2] : vector<2x16x16xf32> to vector<2x16xf32>
    %111 = vector.shape_cast %110 : vector<2x16xf32> to vector<2x16x1xf32>
    %112 = tpu.reciprocal %111 {approx = true} : vector<2x16x1xf32> -> vector<2x16x1xf32>
    %113 = vector.broadcast %112 : vector<2x16x1xf32> to vector<2x16x16xf32>
    %114 = arith.mulf %109, %113 : vector<2x16x16xf32>
    %115 = arith.truncf %114 : vector<2x16x16xf32> to vector<2x16x16xbf16>
    "tpu.trace_start"() <{level = 10 : i32, message = "bqk,bkd->bqd"}> : () -> ()
    %cst_36 = arith.constant dense<0.000000e+00> : vector<2x16x16xf32>
    %116 = tpu.matmul %115, %97, %cst_36 {dimension_numbers = #tpu.dot_dimension_numbers<[2], [1], [1], [2], [0, 0, 0, 1, 1, 2], [0], [0]>} : vector<2x16x16xbf16>, vector<2x16x16xbf16>, vector<2x16x16xf32> -> vector<2x16x16xf32>
    "tpu.trace_stop"() : () -> ()
    %117 = vector.shape_cast %116 : vector<2x16x16xf32> to vector<32x16xf32>
    %118 = arith.truncf %117 : vector<32x16xf32> to vector<32x16xbf16>
    %119 = vector.extract_strided_slice %54 {offsets = [16, 0], sizes = [16, 64], strides = [1, 1]} : vector<64x64xbf16> to vector<16x64xbf16>
    %cst_37 = arith.constant dense<0.000000e+00> : vector<32x64xf32>
    %120 = tpu.matmul %118, %119, %cst_37 {dimension_numbers = #tpu.dot_dimension_numbers<[1], [0], [0], [1], [0, 0, 1, 1], [], []>} : vector<32x16xbf16>, vector<16x64xbf16>, vector<32x64xf32> -> vector<32x64xf32>
    %121 = arith.addf %88, %120 : vector<32x64xf32>
    %122 = vector.extract_strided_slice %46 {offsets = [0, 32], sizes = [32, 16], strides = [1, 1]} : vector<32x64xf32> to vector<32x16xf32>
    %123 = vector.shape_cast %122 : vector<32x16xf32> to vector<2x16x16xf32>
    %124 = arith.truncf %123 : vector<2x16x16xf32> to vector<2x16x16xbf16>
    %125 = vector.extract_strided_slice %47 {offsets = [0, 32], sizes = [32, 16], strides = [1, 1]} : vector<32x64xf32> to vector<32x16xf32>
    %126 = vector.shape_cast %125 : vector<32x16xf32> to vector<2x16x16xf32>
    %127 = arith.truncf %126 : vector<2x16x16xf32> to vector<2x16x16xbf16>
    %128 = vector.extract_strided_slice %48 {offsets = [0, 32], sizes = [32, 16], strides = [1, 1]} : vector<32x64xf32> to vector<32x16xf32>
    %129 = vector.shape_cast %128 : vector<32x16xf32> to vector<2x16x16xf32>
    %130 = arith.truncf %129 : vector<2x16x16xf32> to vector<2x16x16xbf16>
    "tpu.trace_start"() <{level = 10 : i32, message = "bqd,bkd->bqk"}> : () -> ()
    %cst_38 = arith.constant dense<0.000000e+00> : vector<2x16x16xf32>
    %131 = tpu.matmul %124, %127, %cst_38 {dimension_numbers = #tpu.dot_dimension_numbers<[2], [2], [1], [1], [0, 0, 0, 1, 1, 1], [0], [0]>} : vector<2x16x16xbf16>, vector<2x16x16xbf16>, vector<2x16x16xf32> -> vector<2x16x16xf32>
    "tpu.trace_stop"() : () -> ()
    %cst_39 = arith.constant 2.500000e-01 : f32
    %132 = vector.broadcast %cst_39 : f32 to vector<2x16x16xf32>
    %133 = arith.mulf %131, %132 : vector<2x16x16xf32>
    %cst_40 = arith.constant -1.000000e+30 : f32
    %134 = vector.shape_cast %52 : vector<1x16x16xi1> to vector<1x16x16xi1>
    %135 = vector.broadcast %134 : vector<1x16x16xi1> to vector<2x16x16xi1>
    %136 = vector.broadcast %cst_40 : f32 to vector<2x16x16xf32>
    %137 = arith.select %135, %133, %136 : vector<2x16x16xi1>, vector<2x16x16xf32>
    %cst_41 = arith.constant dense<0xFF800000> : vector<2x16xf32>
    %138 = vector.multi_reduction <maximumf>, %137, %cst_41 [2] : vector<2x16x16xf32> to vector<2x16xf32>
    %139 = vector.shape_cast %138 : vector<2x16xf32> to vector<2x16x1xf32>
    %140 = vector.broadcast %139 : vector<2x16x1xf32> to vector<2x16x16xf32>
    %141 = arith.subf %137, %140 : vector<2x16x16xf32>
    %142 = math.exp %141 : vector<2x16x16xf32>
    %cst_42 = arith.constant dense<0.000000e+00> : vector<2x16xf32>
    %143 = vector.multi_reduction <add>, %142, %cst_42 [2] : vector<2x16x16xf32> to vector<2x16xf32>
    %144 = vector.shape_cast %143 : vector<2x16xf32> to vector<2x16x1xf32>
    %145 = tpu.reciprocal %144 {approx = true} : vector<2x16x1xf32> -> vector<2x16x1xf32>
    %146 = vector.broadcast %145 : vector<2x16x1xf32> to vector<2x16x16xf32>
    %147 = arith.mulf %142, %146 : vector<2x16x16xf32>
    %148 = arith.truncf %147 : vector<2x16x16xf32> to vector<2x16x16xbf16>
    "tpu.trace_start"() <{level = 10 : i32, message = "bqk,bkd->bqd"}> : () -> ()
    %cst_43 = arith.constant dense<0.000000e+00> : vector<2x16x16xf32>
    %149 = tpu.matmul %148, %130, %cst_43 {dimension_numbers = #tpu.dot_dimension_numbers<[2], [1], [1], [2], [0, 0, 0, 1, 1, 2], [0], [0]>} : vector<2x16x16xbf16>, vector<2x16x16xbf16>, vector<2x16x16xf32> -> vector<2x16x16xf32>
    "tpu.trace_stop"() : () -> ()
    %150 = vector.shape_cast %149 : vector<2x16x16xf32> to vector<32x16xf32>
    %151 = arith.truncf %150 : vector<32x16xf32> to vector<32x16xbf16>
    %152 = vector.extract_strided_slice %54 {offsets = [32, 0], sizes = [16, 64], strides = [1, 1]} : vector<64x64xbf16> to vector<16x64xbf16>
    %cst_44 = arith.constant dense<0.000000e+00> : vector<32x64xf32>
    %153 = tpu.matmul %151, %152, %cst_44 {dimension_numbers = #tpu.dot_dimension_numbers<[1], [0], [0], [1], [0, 0, 1, 1], [], []>} : vector<32x16xbf16>, vector<16x64xbf16>, vector<32x64xf32> -> vector<32x64xf32>
    %154 = arith.addf %121, %153 : vector<32x64xf32>
    %155 = vector.extract_strided_slice %46 {offsets = [0, 48], sizes = [32, 16], strides = [1, 1]} : vector<32x64xf32> to vector<32x16xf32>
    %156 = vector.shape_cast %155 : vector<32x16xf32> to vector<2x16x16xf32>
    %157 = arith.truncf %156 : vector<2x16x16xf32> to vector<2x16x16xbf16>
    %158 = vector.extract_strided_slice %47 {offsets = [0, 48], sizes = [32, 16], strides = [1, 1]} : vector<32x64xf32> to vector<32x16xf32>
    %159 = vector.shape_cast %158 : vector<32x16xf32> to vector<2x16x16xf32>
    %160 = arith.truncf %159 : vector<2x16x16xf32> to vector<2x16x16xbf16>
    %161 = vector.extract_strided_slice %48 {offsets = [0, 48], sizes = [32, 16], strides = [1, 1]} : vector<32x64xf32> to vector<32x16xf32>
    %162 = vector.shape_cast %161 : vector<32x16xf32> to vector<2x16x16xf32>
    %163 = arith.truncf %162 : vector<2x16x16xf32> to vector<2x16x16xbf16>
    "tpu.trace_start"() <{level = 10 : i32, message = "bqd,bkd->bqk"}> : () -> ()
    %cst_45 = arith.constant dense<0.000000e+00> : vector<2x16x16xf32>
    %164 = tpu.matmul %157, %160, %cst_45 {dimension_numbers = #tpu.dot_dimension_numbers<[2], [2], [1], [1], [0, 0, 0, 1, 1, 1], [0], [0]>} : vector<2x16x16xbf16>, vector<2x16x16xbf16>, vector<2x16x16xf32> -> vector<2x16x16xf32>
    "tpu.trace_stop"() : () -> ()
    %cst_46 = arith.constant 2.500000e-01 : f32
    %165 = vector.broadcast %cst_46 : f32 to vector<2x16x16xf32>
    %166 = arith.mulf %164, %165 : vector<2x16x16xf32>
    %cst_47 = arith.constant -1.000000e+30 : f32
    %167 = vector.shape_cast %52 : vector<1x16x16xi1> to vector<1x16x16xi1>
    %168 = vector.broadcast %167 : vector<1x16x16xi1> to vector<2x16x16xi1>
    %169 = vector.broadcast %cst_47 : f32 to vector<2x16x16xf32>
    %170 = arith.select %168, %166, %169 : vector<2x16x16xi1>, vector<2x16x16xf32>
    %cst_48 = arith.constant dense<0xFF800000> : vector<2x16xf32>
    %171 = vector.multi_reduction <maximumf>, %170, %cst_48 [2] : vector<2x16x16xf32> to vector<2x16xf32>
    %172 = vector.shape_cast %171 : vector<2x16xf32> to vector<2x16x1xf32>
    %173 = vector.broadcast %172 : vector<2x16x1xf32> to vector<2x16x16xf32>
    %174 = arith.subf %170, %173 : vector<2x16x16xf32>
    %175 = math.exp %174 : vector<2x16x16xf32>
    %cst_49 = arith.constant dense<0.000000e+00> : vector<2x16xf32>
    %176 = vector.multi_reduction <add>, %175, %cst_49 [2] : vector<2x16x16xf32> to vector<2x16xf32>
    %177 = vector.shape_cast %176 : vector<2x16xf32> to vector<2x16x1xf32>
    %178 = tpu.reciprocal %177 {approx = true} : vector<2x16x1xf32> -> vector<2x16x1xf32>
    %179 = vector.broadcast %178 : vector<2x16x1xf32> to vector<2x16x16xf32>
    %180 = arith.mulf %175, %179 : vector<2x16x16xf32>
    %181 = arith.truncf %180 : vector<2x16x16xf32> to vector<2x16x16xbf16>
    "tpu.trace_start"() <{level = 10 : i32, message = "bqk,bkd->bqd"}> : () -> ()
    %cst_50 = arith.constant dense<0.000000e+00> : vector<2x16x16xf32>
    %182 = tpu.matmul %181, %163, %cst_50 {dimension_numbers = #tpu.dot_dimension_numbers<[2], [1], [1], [2], [0, 0, 0, 1, 1, 2], [0], [0]>} : vector<2x16x16xbf16>, vector<2x16x16xbf16>, vector<2x16x16xf32> -> vector<2x16x16xf32>
    "tpu.trace_stop"() : () -> ()
    %183 = vector.shape_cast %182 : vector<2x16x16xf32> to vector<32x16xf32>
    %184 = arith.truncf %183 : vector<32x16xf32> to vector<32x16xbf16>
    %185 = vector.extract_strided_slice %54 {offsets = [48, 0], sizes = [16, 64], strides = [1, 1]} : vector<64x64xbf16> to vector<16x64xbf16>
    %cst_51 = arith.constant dense<0.000000e+00> : vector<32x64xf32>
    %186 = tpu.matmul %184, %185, %cst_51 {dimension_numbers = #tpu.dot_dimension_numbers<[1], [0], [0], [1], [0, 0, 1, 1], [], []>} : vector<32x16xbf16>, vector<16x64xbf16>, vector<32x64xf32> -> vector<32x64xf32>
    %187 = arith.addf %154, %186 : vector<32x64xf32>
    %188 = arith.addf %14, %187 : vector<32x64xf32>
    %c0_52 = arith.constant 0 : index
    %c0_53 = arith.constant 0 : index
    %189 = vector.load %arg11[%c0_52, %c0_53] : memref<1x64xf32, #tpu.memory_space<vmem>>, vector<1x64xf32>
    %190 = vector.broadcast %189 : vector<1x64xf32> to vector<32x64xf32>
    %191 = arith.addf %188, %190 : vector<32x64xf32>
    %c0_54 = arith.constant 0 : index
    %c0_55 = arith.constant 0 : index
    %192 = vector.load %arg12[%c0_54, %c0_55] : memref<1x64xf32, #tpu.memory_space<vmem>>, vector<1x64xf32>
    %c0_56 = arith.constant 0 : index
    %c0_57 = arith.constant 0 : index
    %193 = vector.load %arg13[%c0_56, %c0_57] : memref<1x64xf32, #tpu.memory_space<vmem>>, vector<1x64xf32>
    %cst_58 = arith.constant dense<0.000000e+00> : vector<32xf32>
    %194 = vector.multi_reduction <add>, %191, %cst_58 [1] : vector<32x64xf32> to vector<32xf32>
    %195 = vector.shape_cast %194 : vector<32xf32> to vector<32x1xf32>
    %cst_59 = arith.constant 6.400000e+01 : f32
    %196 = vector.broadcast %cst_59 : f32 to vector<32x1xf32>
    %197 = arith.divf %195, %196 : vector<32x1xf32>
    %198 = vector.broadcast %197 : vector<32x1xf32> to vector<32x64xf32>
    %199 = arith.subf %191, %198 : vector<32x64xf32>
    %200 = arith.mulf %199, %199 : vector<32x64xf32>
    %cst_60 = arith.constant dense<0.000000e+00> : vector<32xf32>
    %201 = vector.multi_reduction <add>, %200, %cst_60 [1] : vector<32x64xf32> to vector<32xf32>
    %202 = vector.shape_cast %201 : vector<32xf32> to vector<32x1xf32>
    %cst_61 = arith.constant 6.400000e+01 : f32
    %203 = vector.broadcast %cst_61 : f32 to vector<32x1xf32>
    %204 = arith.divf %202, %203 : vector<32x1xf32>
    %205 = vector.broadcast %197 : vector<32x1xf32> to vector<32x64xf32>
    %206 = arith.subf %191, %205 : vector<32x64xf32>
    %cst_62 = arith.constant 9.99999974E-6 : f32
    %207 = vector.broadcast %cst_62 : f32 to vector<32x1xf32>
    %208 = arith.addf %204, %207 : vector<32x1xf32>
    %209 = math.rsqrt %208 : vector<32x1xf32>
    %210 = vector.broadcast %209 : vector<32x1xf32> to vector<32x64xf32>
    %211 = arith.mulf %206, %210 : vector<32x64xf32>
    %212 = vector.broadcast %192 : vector<1x64xf32> to vector<32x64xf32>
    %213 = arith.mulf %211, %212 : vector<32x64xf32>
    %214 = vector.broadcast %193 : vector<1x64xf32> to vector<32x64xf32>
    %215 = arith.addf %213, %214 : vector<32x64xf32>
    %216 = arith.truncf %215 : vector<32x64xf32> to vector<32x64xbf16>
    %c0_63 = arith.constant 0 : index
    %c0_64 = arith.constant 0 : index
    %217 = vector.load %arg14[%c0_63, %c0_64] : memref<64x256xf32, #tpu.memory_space<vmem>>, vector<64x256xf32>
    %218 = arith.truncf %217 : vector<64x256xf32> to vector<64x256xbf16>
    %cst_65 = arith.constant dense<0.000000e+00> : vector<32x256xf32>
    %219 = tpu.matmul %216, %218, %cst_65 {dimension_numbers = #tpu.dot_dimension_numbers<[1], [0], [0], [1], [0, 0, 1, 1], [], []>} : vector<32x64xbf16>, vector<64x256xbf16>, vector<32x256xf32> -> vector<32x256xf32>
    %c0_66 = arith.constant 0 : index
    %c0_67 = arith.constant 0 : index
    %220 = vector.load %arg15[%c0_66, %c0_67] : memref<1x256xf32, #tpu.memory_space<vmem>>, vector<1x256xf32>
    %221 = vector.broadcast %220 : vector<1x256xf32> to vector<32x256xf32>
    %222 = arith.addf %219, %221 : vector<32x256xf32>
    %cst_68 = arith.constant 5.000000e-01 : f32
    %223 = vector.broadcast %cst_68 : f32 to vector<32x256xf32>
    %224 = arith.mulf %223, %222 : vector<32x256xf32>
    %cst_69 = arith.constant 4.471500e-02 : f32
    %225 = vector.broadcast %cst_69 : f32 to vector<32x256xf32>
    %226 = arith.mulf %225, %222 : vector<32x256xf32>
    %227 = arith.mulf %226, %222 : vector<32x256xf32>
    %228 = arith.mulf %227, %222 : vector<32x256xf32>
    %229 = arith.addf %222, %228 : vector<32x256xf32>
    %cst_70 = arith.constant 0.797884583 : f32
    %230 = vector.broadcast %cst_70 : f32 to vector<32x256xf32>
    %231 = arith.mulf %230, %229 : vector<32x256xf32>
    %232 = math.tanh %231 : vector<32x256xf32>
    %cst_71 = arith.constant 1.000000e+00 : f32
    %233 = vector.broadcast %cst_71 : f32 to vector<32x256xf32>
    %234 = arith.addf %233, %232 : vector<32x256xf32>
    %235 = arith.mulf %224, %234 : vector<32x256xf32>
    %236 = arith.truncf %235 : vector<32x256xf32> to vector<32x256xbf16>
    %c0_72 = arith.constant 0 : index
    %c0_73 = arith.constant 0 : index
    %237 = vector.load %arg16[%c0_72, %c0_73] : memref<256x64xf32, #tpu.memory_space<vmem>>, vector<256x64xf32>
    %238 = arith.truncf %237 : vector<256x64xf32> to vector<256x64xbf16>
    %cst_74 = arith.constant dense<0.000000e+00> : vector<32x64xf32>
    %239 = tpu.matmul %236, %238, %cst_74 {dimension_numbers = #tpu.dot_dimension_numbers<[1], [0], [0], [1], [0, 0, 1, 1], [], []>} : vector<32x256xbf16>, vector<256x64xbf16>, vector<32x64xf32> -> vector<32x64xf32>
    %c0_75 = arith.constant 0 : index
    %c0_76 = arith.constant 0 : index
    %240 = vector.load %arg17[%c0_75, %c0_76] : memref<1x64xf32, #tpu.memory_space<vmem>>, vector<1x64xf32>
    %241 = vector.broadcast %240 : vector<1x64xf32> to vector<32x64xf32>
    %242 = arith.addf %239, %241 : vector<32x64xf32>
    %243 = arith.addf %191, %242 : vector<32x64xf32>
    %c0_77 = arith.constant 0 : index
    %c0_78 = arith.constant 0 : index
    %244 = vector.load %arg18[%c0_77, %c0_78] : memref<1x64xf32, #tpu.memory_space<vmem>>, vector<1x64xf32>
    %c0_79 = arith.constant 0 : index
    %c0_80 = arith.constant 0 : index
    %245 = vector.load %arg19[%c0_79, %c0_80] : memref<1x64xf32, #tpu.memory_space<vmem>>, vector<1x64xf32>
    %cst_81 = arith.constant dense<0.000000e+00> : vector<32xf32>
    %246 = vector.multi_reduction <add>, %243, %cst_81 [1] : vector<32x64xf32> to vector<32xf32>
    %247 = vector.shape_cast %246 : vector<32xf32> to vector<32x1xf32>
    %cst_82 = arith.constant 6.400000e+01 : f32
    %248 = vector.broadcast %cst_82 : f32 to vector<32x1xf32>
    %249 = arith.divf %247, %248 : vector<32x1xf32>
    %250 = vector.broadcast %249 : vector<32x1xf32> to vector<32x64xf32>
    %251 = arith.subf %243, %250 : vector<32x64xf32>
    %252 = arith.mulf %251, %251 : vector<32x64xf32>
    %cst_83 = arith.constant dense<0.000000e+00> : vector<32xf32>
    %253 = vector.multi_reduction <add>, %252, %cst_83 [1] : vector<32x64xf32> to vector<32xf32>
    %254 = vector.shape_cast %253 : vector<32xf32> to vector<32x1xf32>
    %cst_84 = arith.constant 6.400000e+01 : f32
    %255 = vector.broadcast %cst_84 : f32 to vector<32x1xf32>
    %256 = arith.divf %254, %255 : vector<32x1xf32>
    %257 = vector.broadcast %249 : vector<32x1xf32> to vector<32x64xf32>
    %258 = arith.subf %243, %257 : vector<32x64xf32>
    %cst_85 = arith.constant 9.99999974E-6 : f32
    %259 = vector.broadcast %cst_85 : f32 to vector<32x1xf32>
    %260 = arith.addf %256, %259 : vector<32x1xf32>
    %261 = math.rsqrt %260 : vector<32x1xf32>
    %262 = vector.broadcast %261 : vector<32x1xf32> to vector<32x64xf32>
    %263 = arith.mulf %258, %262 : vector<32x64xf32>
    %264 = vector.broadcast %244 : vector<1x64xf32> to vector<32x64xf32>
    %265 = arith.mulf %263, %264 : vector<32x64xf32>
    %266 = vector.broadcast %245 : vector<1x64xf32> to vector<32x64xf32>
    %267 = arith.addf %265, %266 : vector<32x64xf32>
    %c0_86 = arith.constant 0 : index
    %c0_87 = arith.constant 0 : index
    %268 = vector.load %arg20[%c0_86, %c0_87] : memref<1x64xf32, #tpu.memory_space<vmem>>, vector<1x64xf32>
    %269 = vector.broadcast %268 : vector<1x64xf32> to vector<32x64xf32>
    %270 = arith.mulf %267, %269 : vector<32x64xf32>
    %271 = vector.shape_cast %270 : vector<32x64xf32> to vector<2x16x64xf32>
    %cst_88 = arith.constant dense<0.000000e+00> : vector<2x16xf32>
    %272 = vector.multi_reduction <add>, %271, %cst_88 [2] : vector<2x16x64xf32> to vector<2x16xf32>
    %c0_89 = arith.constant 0 : index
    %c0_90 = arith.constant 0 : index
    %273 = vector.load %arg21[%c0_89, %c0_90] : memref<2x16xf32, #tpu.memory_space<vmem>>, vector<2x16xf32>
    tpu.vector_store %arg21[%c0_89, %c0_90], %272 {strides = array<i32>} : memref<2x16xf32, #tpu.memory_space<vmem>>, vector<2x16xf32>,
    %c0_91 = arith.constant 0 : index
    %c0_92 = arith.constant 0 : index
    %274 = vector.load %arg2[%c0_91, %c0_92] : memref<2x16xf32, #tpu.memory_space<vmem>>, vector<2x16xf32>
    %275 = arith.subf %272, %274 : vector<2x16xf32>
    %276 = arith.mulf %275, %275 : vector<2x16xf32>
    %cst_93 = arith.constant dense<0.000000e+00> : vector<2xf32>
    %277 = vector.multi_reduction <add>, %276, %cst_93 [1] : vector<2x16xf32> to vector<2xf32>
    %278 = vector.shape_cast %277 : vector<2xf32> to vector<2x1xf32>
    %cst_94 = arith.constant dense<0.000000e+00> : vector<1xf32>
    %279 = vector.multi_reduction <add>, %278, %cst_94 [0] : vector<2x1xf32> to vector<1xf32>
    %280 = vector.shape_cast %279 : vector<1xf32> to vector<1x1xf32>
    %c0_i32 = arith.constant 0 : i32
    %281 = arith.cmpi eq, %arg0, %c0_i32 : i32
    %282 = arith.extui %281 : i1 to i32
    %c0_i32_95 = arith.constant 0 : i32
    %283 = arith.cmpi ne, %282, %c0_i32_95 : i32
    scf.if %283 {
      %cst_102 = arith.constant 0.000000e+00 : f32
      %290 = vector.broadcast %cst_102 : f32 to vector<1x1xf32>
      %c0_103 = arith.constant 0 : index
      %c0_104 = arith.constant 0 : index
      %291 = vector.load %arg23[%c0_103, %c0_104] : memref<1x1xf32, #tpu.memory_space<vmem>>, vector<1x1xf32>
      tpu.vector_store %arg23[%c0_103, %c0_104], %290 {strides = array<i32>} : memref<1x1xf32, #tpu.memory_space<vmem>>, vector<1x1xf32>,
    } else {
    }
    %c0_96 = arith.constant 0 : index
    %c0_97 = arith.constant 0 : index
    %284 = vector.load %arg23[%c0_96, %c0_97] : memref<1x1xf32, #tpu.memory_space<vmem>>, vector<1x1xf32>
    %285 = arith.addf %284, %280 : vector<1x1xf32>
    %c0_98 = arith.constant 0 : index
    %c0_99 = arith.constant 0 : index
    %286 = vector.load %arg23[%c0_98, %c0_99] : memref<1x1xf32, #tpu.memory_space<vmem>>, vector<1x1xf32>
    tpu.vector_store %arg23[%c0_98, %c0_99], %285 {strides = array<i32>} : memref<1x1xf32, #tpu.memory_space<vmem>>, vector<1x1xf32>,
    %c0_i32_100 = arith.constant 0 : i32
    %287 = arith.cmpi eq, %arg0, %c0_i32_100 : i32
    %288 = arith.extui %287 : i1 to i32
    %c0_i32_101 = arith.constant 0 : i32
    %289 = arith.cmpi ne, %288, %c0_i32_101 : i32
    scf.if %289 {
      %c0_102 = arith.constant 0 : index
      %c0_103 = arith.constant 0 : index
      %290 = vector.load %arg23[%c0_102, %c0_103] : memref<1x1xf32, #tpu.memory_space<vmem>>, vector<1x1xf32>
      %cst_104 = arith.constant 3.125000e-02 : f32
      %291 = vector.broadcast %cst_104 : f32 to vector<1x1xf32>
      %292 = arith.mulf %290, %291 : vector<1x1xf32>
      %c0_105 = arith.constant 0 : index
      %c0_106 = arith.constant 0 : index
      %293 = vector.load %arg22[%c0_105, %c0_106] : memref<1x1xf32, #tpu.memory_space<vmem>>, vector<1x1xf32>
      tpu.vector_store %arg22[%c0_105, %c0_106], %292 {strides = array<i32>} : memref<1x1xf32, #tpu.memory_space<vmem>>, vector<1x1xf32>,
    } else {
    }
    return
  }
  func.func @transform_0(%arg0: i32) -> (i32, i32) {
    %c0_i32 = arith.constant 0 : i32
    %c0_i32_0 = arith.constant 0 : i32
    return %arg0, %c0_i32 : i32, i32
  }
  func.func @transform_1(%arg0: i32) -> (i32, i32) {
    %c0_i32 = arith.constant 0 : i32
    %c0_i32_0 = arith.constant 0 : i32
    return %arg0, %c0_i32 : i32, i32
  }
  func.func @transform_2(%arg0: i32) -> (i32, i32) {
    %c0_i32 = arith.constant 0 : i32
    %c0_i32_0 = arith.constant 0 : i32
    %c0_i32_1 = arith.constant 0 : i32
    return %c0_i32, %c0_i32_0 : i32, i32
  }
  func.func @transform_3(%arg0: i32) -> (i32, i32) {
    %c0_i32 = arith.constant 0 : i32
    %c0_i32_0 = arith.constant 0 : i32
    %c0_i32_1 = arith.constant 0 : i32
    return %c0_i32, %c0_i32_0 : i32, i32
  }
  func.func @transform_4(%arg0: i32) -> (i32, i32) {
    %c0_i32 = arith.constant 0 : i32
    %c0_i32_0 = arith.constant 0 : i32
    %c0_i32_1 = arith.constant 0 : i32
    return %c0_i32, %c0_i32_0 : i32, i32
  }
  func.func @transform_5(%arg0: i32) -> (i32, i32) {
    %c0_i32 = arith.constant 0 : i32
    %c0_i32_0 = arith.constant 0 : i32
    %c0_i32_1 = arith.constant 0 : i32
    return %c0_i32, %c0_i32_0 : i32, i32
  }
  func.func @transform_6(%arg0: i32) -> (i32, i32) {
    %c0_i32 = arith.constant 0 : i32
    %c0_i32_0 = arith.constant 0 : i32
    %c0_i32_1 = arith.constant 0 : i32
    return %c0_i32, %c0_i32_0 : i32, i32
  }
  func.func @transform_7(%arg0: i32) -> (i32, i32) {
    %c0_i32 = arith.constant 0 : i32
    %c0_i32_0 = arith.constant 0 : i32
    %c0_i32_1 = arith.constant 0 : i32
    return %c0_i32, %c0_i32_0 : i32, i32
  }
  func.func @transform_8(%arg0: i32) -> (i32, i32) {
    %c0_i32 = arith.constant 0 : i32
    %c0_i32_0 = arith.constant 0 : i32
    %c0_i32_1 = arith.constant 0 : i32
    return %c0_i32, %c0_i32_0 : i32, i32
  }
  func.func @transform_9(%arg0: i32) -> (i32, i32) {
    %c0_i32 = arith.constant 0 : i32
    %c0_i32_0 = arith.constant 0 : i32
    %c0_i32_1 = arith.constant 0 : i32
    return %c0_i32, %c0_i32_0 : i32, i32
  }
  func.func @transform_10(%arg0: i32) -> (i32, i32) {
    %c0_i32 = arith.constant 0 : i32
    %c0_i32_0 = arith.constant 0 : i32
    %c0_i32_1 = arith.constant 0 : i32
    return %c0_i32, %c0_i32_0 : i32, i32
  }
  func.func @transform_11(%arg0: i32) -> (i32, i32) {
    %c0_i32 = arith.constant 0 : i32
    %c0_i32_0 = arith.constant 0 : i32
    %c0_i32_1 = arith.constant 0 : i32
    return %c0_i32, %c0_i32_0 : i32, i32
  }
  func.func @transform_12(%arg0: i32) -> (i32, i32) {
    %c0_i32 = arith.constant 0 : i32
    %c0_i32_0 = arith.constant 0 : i32
    %c0_i32_1 = arith.constant 0 : i32
    return %c0_i32, %c0_i32_0 : i32, i32
  }
  func.func @transform_13(%arg0: i32) -> (i32, i32) {
    %c0_i32 = arith.constant 0 : i32
    %c0_i32_0 = arith.constant 0 : i32
    %c0_i32_1 = arith.constant 0 : i32
    return %c0_i32, %c0_i32_0 : i32, i32
  }
  func.func @transform_14(%arg0: i32) -> (i32, i32) {
    %c0_i32 = arith.constant 0 : i32
    %c0_i32_0 = arith.constant 0 : i32
    %c0_i32_1 = arith.constant 0 : i32
    return %c0_i32, %c0_i32_0 : i32, i32
  }
  func.func @transform_15(%arg0: i32) -> (i32, i32) {
    %c0_i32 = arith.constant 0 : i32
    %c0_i32_0 = arith.constant 0 : i32
    %c0_i32_1 = arith.constant 0 : i32
    return %c0_i32, %c0_i32_0 : i32, i32
  }
  func.func @transform_16(%arg0: i32) -> (i32, i32) {
    %c0_i32 = arith.constant 0 : i32
    %c0_i32_0 = arith.constant 0 : i32
    %c0_i32_1 = arith.constant 0 : i32
    return %c0_i32, %c0_i32_0 : i32, i32
  }
  func.func @transform_17(%arg0: i32) -> (i32, i32) {
    %c0_i32 = arith.constant 0 : i32
    %c0_i32_0 = arith.constant 0 : i32
    %c0_i32_1 = arith.constant 0 : i32
    return %c0_i32, %c0_i32_0 : i32, i32
  }
  func.func @transform_18(%arg0: i32) -> (i32, i32) {
    %c0_i32 = arith.constant 0 : i32
    %c0_i32_0 = arith.constant 0 : i32
    %c0_i32_1 = arith.constant 0 : i32
    return %c0_i32, %c0_i32_0 : i32, i32
  }
  func.func @transform_19(%arg0: i32) -> (i32, i32) {
    %c0_i32 = arith.constant 0 : i32
    %c0_i32_0 = arith.constant 0 : i32
    %c0_i32_1 = arith.constant 0 : i32
    return %c0_i32, %c0_i32_0 : i32, i32
  }
  func.func @transform_20(%arg0: i32) -> (i32, i32) {
    %c0_i32 = arith.constant 0 : i32
    %c0_i32_0 = arith.constant 0 : i32
    return %arg0, %c0_i32 : i32, i32
  }
  func.func @transform_21(%arg0: i32) -> (i32, i32) {
    %c0_i32 = arith.constant 0 : i32
    %c0_i32_0 = arith.constant 0 : i32
    %c0_i32_1 = arith.constant 0 : i32
    return %c0_i32, %c0_i32_0 : i32, i32
  }
}

</mosaic_0001>

<llo_original>
// kernel: tpu_custom_call.1
$region0: #{tpu_custom_call.1}
  #allocation0 [shape = 'u32[]', space=smem, size = 0x4, offset = 0x4, fixed_abs, tag = 'smem constant byte address 0x4 - core index']
  #allocation1 [shape = 'u32[72,128]{1,0:T(1,128)}', space=vmem, size = 0x9000, scoped, tag = 'internal scratch']
  #allocation2 [shape = 'f32[1,1]{1,0:T(1,128)}', space=vmem, size = 0x200, scoped, tag = 'scratch operand']
  %s0 = inlined_call_operand.vmem [shape: f32[2,16], index: 0, kind: input, shape index: {}]
  %s1 = inlined_call_operand.vmem [shape: f32[2,16], index: 1, kind: input, shape index: {}]
  %s2 = inlined_call_operand.vmem [shape: f32[16,64], index: 2, kind: input, shape index: {}]
  %s3 = inlined_call_operand.vmem [shape: f32[1,64], index: 3, kind: input, shape index: {}]
  %s4 = inlined_call_operand.vmem [shape: f32[16,64], index: 4, kind: input, shape index: {}]
  %s5 = inlined_call_operand.vmem [shape: f32[1,64], index: 5, kind: input, shape index: {}]
  %s6 = inlined_call_operand.vmem [shape: f32[1,64], index: 6, kind: input, shape index: {}]
  %s7 = inlined_call_operand.vmem [shape: f32[64,192], index: 7, kind: input, shape index: {}]
  %s8 = inlined_call_operand.vmem [shape: f32[1,192], index: 8, kind: input, shape index: {}]
  %s9 = inlined_call_operand.vmem [shape: f32[64,64], index: 9, kind: input, shape index: {}]
  %s10 = inlined_call_operand.vmem [shape: f32[1,64], index: 10, kind: input, shape index: {}]
  %s11 = inlined_call_operand.vmem [shape: f32[1,64], index: 11, kind: input, shape index: {}]
  %s12 = inlined_call_operand.vmem [shape: f32[1,64], index: 12, kind: input, shape index: {}]
  %s13 = inlined_call_operand.vmem [shape: f32[64,256], index: 13, kind: input, shape index: {}]
  %s14 = inlined_call_operand.vmem [shape: f32[1,256], index: 14, kind: input, shape index: {}]
  %s15 = inlined_call_operand.vmem [shape: f32[256,64], index: 15, kind: input, shape index: {}]
  %s16 = inlined_call_operand.vmem [shape: f32[1,64], index: 16, kind: input, shape index: {}]
  %s17 = inlined_call_operand.vmem [shape: f32[1,64], index: 17, kind: input, shape index: {}]
  %s18 = inlined_call_operand.vmem [shape: f32[1,64], index: 18, kind: input, shape index: {}]
  %s19 = inlined_call_operand.vmem [shape: f32[1,64], index: 19, kind: input, shape index: {}]
  %s20 = inlined_call_operand.hbm [shape: f32[2,16], index: 20, kind: output, shape index: {0}]
  %s21 = inlined_call_operand.hbm [shape: f32[1,1], index: 21, kind: output, shape index: {1}]
  %22 = xla_tuple %s20, %s21
  %s23 = sld [smem:[#allocation0]]
  $region106: #{tpu_custom_call.1} parent=0
    _
  %s25 = ssub.s32 1, %s23
  %s26 = scalar_select 0, %s25, %s23
  $region1: #{tpu_custom_call.1} parent=0
    #allocation3 [shape = 'u8[1024]{0}', space=vmem, size = 0x400, scoped, tag = 'output window, operand 0, single buffered']
    #allocation4 [shape = 's32[1]{0}', space=sflag, size = 0x4, scoped, tag = 'scoped memory for tpu_custom_call.1']
    #allocation5 [shape = 'u8[512]{0}', space=vmem, size = 0x400, scoped, tag = 'output window, operand 1, single buffered']
    #allocation6 [shape = 's32[1]{0}', space=sflag, size = 0x4, scoped, tag = 'scoped memory for tpu_custom_call.1']
    %27 = vsyncpa [#allocation4], 0
    %28 = vsyncpa [#allocation6], 0
    // Predicated region
    $region2: #{tpu_custom_call.1} parent=1 // pred_check
      _
    $region3: #{tpu_custom_call.1} parent=1 // pred_check_branch
      %30 = sbr.rel (0) target = $region5
    $region4: #{tpu_custom_call.1} parent=1 // pred_region
      _
    $region5: #{tpu_custom_call.1} parent=1 // pred_fallthru
      _
    // Predicated region
    $region6: #{tpu_custom_call.1} parent=1 // pred_check
      _
    $region7: #{tpu_custom_call.1} parent=1 // pred_check_branch
      %32 = sbr.rel (0) target = $region9
    $region8: #{tpu_custom_call.1} parent=1 // pred_region
      _
    $region9: #{tpu_custom_call.1} parent=1 // pred_fallthru
      _
    // Predicated region
    $region10: #{tpu_custom_call.1} parent=1 // pred_check
      _
    $region11: #{tpu_custom_call.1} parent=1 // pred_check_branch
      %34 = sbr.rel (0) target = $region13
    $region12: #{tpu_custom_call.1} parent=1 // pred_region
      _
    $region13: #{tpu_custom_call.1} parent=1 // pred_fallthru
      _
    // Predicated region
    $region14: #{tpu_custom_call.1} parent=1 // pred_check
      _
    $region15: #{tpu_custom_call.1} parent=1 // pred_check_branch
      %36 = sbr.rel (0) target = $region17
    $region16: #{tpu_custom_call.1} parent=1 // pred_region
      _
    $region17: #{tpu_custom_call.1} parent=1 // pred_fallthru
      _
    // Predicated region
    $region18: #{tpu_custom_call.1} parent=1 // pred_check
      _
    $region19: #{tpu_custom_call.1} parent=1 // pred_check_branch
      %38 = sbr.rel (0) target = $region21
    $region20: #{tpu_custom_call.1} parent=1 // pred_region
      _
    $region21: #{tpu_custom_call.1} parent=1 // pred_fallthru
      _
    // Predicated region
    $region22: #{tpu_custom_call.1} parent=1 // pred_check
      _
    $region23: #{tpu_custom_call.1} parent=1 // pred_check_branch
      %40 = sbr.rel (0) target = $region25
    $region24: #{tpu_custom_call.1} parent=1 // pred_region
      _
    $region25: #{tpu_custom_call.1} parent=1 // pred_fallthru
      _
    // Predicated region
    $region26: #{tpu_custom_call.1} parent=1 // pred_check
      _
    $region27: #{tpu_custom_call.1} parent=1 // pred_check_branch
      %42 = sbr.rel (0) target = $region29
    $region28: #{tpu_custom_call.1} parent=1 // pred_region
      _
    $region29: #{tpu_custom_call.1} parent=1 // pred_fallthru
      _
    // Predicated region
    $region30: #{tpu_custom_call.1} parent=1 // pred_check
      _
    $region31: #{tpu_custom_call.1} parent=1 // pred_check_branch
      %44 = sbr.rel (0) target = $region33
    $region32: #{tpu_custom_call.1} parent=1 // pred_region
      _
    $region33: #{tpu_custom_call.1} parent=1 // pred_fallthru
      _
    // Predicated region
    $region34: #{tpu_custom_call.1} parent=1 // pred_check
      _
    $region35: #{tpu_custom_call.1} parent=1 // pred_check_branch
      %46 = sbr.rel (0) target = $region37
    $region36: #{tpu_custom_call.1} parent=1 // pred_region
      _
    $region37: #{tpu_custom_call.1} parent=1 // pred_fallthru
      _
    // Predicated region
    $region38: #{tpu_custom_call.1} parent=1 // pred_check
      _
    $region39: #{tpu_custom_call.1} parent=1 // pred_check_branch
      %48 = sbr.rel (0) target = $region41
    $region40: #{tpu_custom_call.1} parent=1 // pred_region
      _
    $region41: #{tpu_custom_call.1} parent=1 // pred_fallthru
      _
    // Predicated region
    $region42: #{tpu_custom_call.1} parent=1 // pred_check
      _
    $region43: #{tpu_custom_call.1} parent=1 // pred_check_branch
      %50 = sbr.rel (0) target = $region45
    $region44: #{tpu_custom_call.1} parent=1 // pred_region
      _
    $region45: #{tpu_custom_call.1} parent=1 // pred_fallthru
      _
    // Predicated region
    $region46: #{tpu_custom_call.1} parent=1 // pred_check
      _
    $region47: #{tpu_custom_call.1} parent=1 // pred_check_branch
      %52 = sbr.rel (0) target = $region49
    $region48: #{tpu_custom_call.1} parent=1 // pred_region
      _
    $region49: #{tpu_custom_call.1} parent=1 // pred_fallthru
      _
    // Predicated region
    $region50: #{tpu_custom_call.1} parent=1 // pred_check
      _
    $region51: #{tpu_custom_call.1} parent=1 // pred_check_branch
      %54 = sbr.rel (0) target = $region53
    $region52: #{tpu_custom_call.1} parent=1 // pred_region
      _
    $region53: #{tpu_custom_call.1} parent=1 // pred_fallthru
      _
    // Predicated region
    $region54: #{tpu_custom_call.1} parent=1 // pred_check
      _
    $region55: #{tpu_custom_call.1} parent=1 // pred_check_branch
      %56 = sbr.rel (0) target = $region57
    $region56: #{tpu_custom_call.1} parent=1 // pred_region
      _
    $region57: #{tpu_custom_call.1} parent=1 // pred_fallthru
      _
    // Predicated region
    $region58: #{tpu_custom_call.1} parent=1 // pred_check
      _
    $region59: #{tpu_custom_call.1} parent=1 // pred_check_branch
      %58 = sbr.rel (0) target = $region61
    $region60: #{tpu_custom_call.1} parent=1 // pred_region
      _
    $region61: #{tpu_custom_call.1} parent=1 // pred_fallthru
      _
    // Predicated region
    $region62: #{tpu_custom_call.1} parent=1 // pred_check
      _
    $region63: #{tpu_custom_call.1} parent=1 // pred_check_branch
      %60 = sbr.rel (0) target = $region65
    $region64: #{tpu_custom_call.1} parent=1 // pred_region
      _
    $region65: #{tpu_custom_call.1} parent=1 // pred_fallthru
      _
    // Predicated region
    $region66: #{tpu_custom_call.1} parent=1 // pred_check
      _
    $region67: #{tpu_custom_call.1} parent=1 // pred_check_branch
      %62 = sbr.rel (0) target = $region69
    $region68: #{tpu_custom_call.1} parent=1 // pred_region
      _
    $region69: #{tpu_custom_call.1} parent=1 // pred_fallthru
      _
    // Predicated region
    $region70: #{tpu_custom_call.1} parent=1 // pred_check
      _
    $region71: #{tpu_custom_call.1} parent=1 // pred_check_branch
      %64 = sbr.rel (0) target = $region73
    $region72: #{tpu_custom_call.1} parent=1 // pred_region
      _
    $region73: #{tpu_custom_call.1} parent=1 // pred_fallthru
      _
    // Predicated region
    $region74: #{tpu_custom_call.1} parent=1 // pred_check
      _
    $region75: #{tpu_custom_call.1} parent=1 // pred_check_branch
      %66 = sbr.rel (0) target = $region77
    $region76: #{tpu_custom_call.1} parent=1 // pred_region
      _
    $region77: #{tpu_custom_call.1} parent=1 // pred_fallthru
      _
    // Predicated region
    $region78: #{tpu_custom_call.1} parent=1 // pred_check
      _
    $region79: #{tpu_custom_call.1} parent=1 // pred_check_branch
      %68 = sbr.rel (0) target = $region81
    $region80: #{tpu_custom_call.1} parent=1 // pred_region
      _
    $region81: #{tpu_custom_call.1} parent=1 // pred_fallthru
      _
    %v70 = vld [vmem:[%s0] sm:$0x3]
    %v71 = vpack.c.bf16 %v70, %v70
    %v72 = vld [vmem:[%s2] sm:$0xff]
    %v73 = vld [vmem:[%s2 + $0x8] sm:$0xff]
    %v74 = vpack.c.bf16 %v73, %v72
    %v75 = vld [vmem:[%s3] sm:$0x1]
    %v77 = vperm.slane %v75, 0
    %vm79 = vcmask 130048
    %v81 = vsel %vm79, %v71, 0
    %83 = vmatpush.bf16.msra.mxu0 0
    %84 = vmatpush.bf16.msra.mxu0 0
    %85 = vmatpush.bf16.msra.mxu0 0
    %86 = vmatpush.bf16.msra.mxu0 0
    %87 = vmatpush.bf16.msra.mxu0 0
    %88 = vmatpush.bf16.msra.mxu0 0
    %89 = vmatpush.bf16.msra.mxu0 0
    %90 = vmatpush.bf16.msra.mxu0 %v74
    %91 = vmatmul.bf16.gmra.mxu0 %v81
    %v92 = vpop.f32.mrf.mxu0
    %v93 = vadd.f32 %v77, %v92
    %v94 = vpop.f32.mrf.mxu0
    %95 = vdwg.mxu0
    %v97 = vrot.slane %v93, 1
    %v98 = vld [vmem:[%s4] sm:$0xff]
    %v99 = vld [vmem:[%s4 + $0x8] sm:$0xff]
    %v100 = vperm.slane %v93, 0
    %v101 = vperm.slane %v97, 0
    %v104 = vadd.f32 %v100, %v98
    %v105 = vadd.f32 %v100, %v99
    %v106 = vadd.f32 %v101, %v98
    %v107 = vadd.f32 %v101, %v99
    %v108 = vld [vmem:[%s5] sm:$0x1]
    %v109 = vld [vmem:[%s6] sm:$0x1]
    %vm110 = vcmask 523264
    %v111 = vsel %vm110, %v104, 0.0
    %112 = vadd.xlane.f32.xlu0 %v111
    %v113 = vpop.xlane.xlu0 %112
    %v114 = vsel %vm110, %v105, 0.0
    %115 = vadd.xlane.f32.xlu0 %v114
    %v116 = vpop.xlane.xlu0 %115
    %v117 = vsel %vm110, %v106, 0.0
    %118 = vadd.xlane.f32.xlu0 %v117
    %v119 = vpop.xlane.xlu0 %118
    %v120 = vsel %vm110, %v107, 0.0
    %121 = vadd.xlane.f32.xlu0 %v120
    %v122 = vpop.xlane.xlu0 %121
    %v123 = vrcp.pop 64.0
    %v124 = vmul.f32 64.0, %v123
    %v125 = vsub.f32 1.0, %v124
    %v126 = vmul.f32 %v123, %v125
    %v127 = vadd.f32 %v123, %v126
    %vm128 = vweird.f32 %v123
    %v129 = vsel %vm128, %v123, %v127
    %v130 = vmul.f32 %v113, %v129
    %v131 = vmul.f32 %v116, %v129
    %v132 = vmul.f32 %v119, %v129
    %v133 = vmul.f32 %v122, %v129
    %v134 = vsub.f32 %v104, %v130
    %v135 = vsub.f32 %v105, %v131
    %v136 = vsub.f32 %v106, %v132
    %v137 = vsub.f32 %v107, %v133
    %v138 = vmul.f32 %v134, %v134
    %v139 = vmul.f32 %v135, %v135
    %v140 = vmul.f32 %v136, %v136
    %v141 = vmul.f32 %v137, %v137
    %v142 = vsel %vm110, %v138, 0.0
    %143 = vadd.xlane.f32.xlu0 %v142
    %v144 = vpop.xlane.xlu0 %143
    %v145 = vsel %vm110, %v139, 0.0
    %146 = vadd.xlane.f32.xlu0 %v145
    %v147 = vpop.xlane.xlu0 %146
    %v148 = vsel %vm110, %v140, 0.0
    %149 = vadd.xlane.f32.xlu0 %v148
    %v150 = vpop.xlane.xlu0 %149
    %v151 = vsel %vm110, %v141, 0.0
    %152 = vadd.xlane.f32.xlu0 %v151
    %v153 = vpop.xlane.xlu0 %152
    %v154 = vmul.f32 %v144, %v129
    %v155 = vmul.f32 %v147, %v129
    %v156 = vmul.f32 %v150, %v129
    %v157 = vmul.f32 %v153, %v129
    %v158 = vadd.f32 %v154, 1e-05
    %v159 = vadd.f32 %v155, 1e-05
    %v160 = vadd.f32 %v156, 1e-05
    %v161 = vadd.f32 %v157, 1e-05
    %v162 = vrsqrt.pop %v158
    %v163 = vmul.f32 %v162, %v158
    %v164 = vmul.f32 %v163, %v162
    %v165 = vmul.f32 0.5, %v164
    %v166 = vsub.f32 1.5, %v165
    %v167 = vmul.f32 %v162, %v166
    %vm168 = vweird.f32 %v158
    %vm169 = vweird.f32 %v162
    %vm170 = vmor %vm168, %vm169
    %v171 = vsel %vm170, %v162, %v167
    %v172 = vrsqrt.pop %v159
    %v173 = vmul.f32 %v172, %v159
    %v174 = vmul.f32 %v173, %v172
    %v175 = vmul.f32 0.5, %v174
    %v176 = vsub.f32 1.5, %v175
    %v177 = vmul.f32 %v172, %v176
    %vm178 = vweird.f32 %v159
    %vm179 = vweird.f32 %v172
    %vm180 = vmor %vm178, %vm179
    %v181 = vsel %vm180, %v172, %v177
    %v182 = vrsqrt.pop %v160
    %v183 = vmul.f32 %v182, %v160
    %v184 = vmul.f32 %v183, %v182
    %v185 = vmul.f32 0.5, %v184
    %v186 = vsub.f32 1.5, %v185
    %v187 = vmul.f32 %v182, %v186
    %vm188 = vweird.f32 %v160
    %vm189 = vweird.f32 %v182
    %vm190 = vmor %vm188, %vm189
    %v191 = vsel %vm190, %v182, %v187
    %v192 = vrsqrt.pop %v161
    %v193 = vmul.f32 %v192, %v161
    %v194 = vmul.f32 %v193, %v192
    %v195 = vmul.f32 0.5, %v194
    %v196 = vsub.f32 1.5, %v195
    %v197 = vmul.f32 %v192, %v196
    %vm198 = vweird.f32 %v161
    %vm199 = vweird.f32 %v192
    %vm200 = vmor %vm198, %vm199
    %v201 = vsel %vm200, %v192, %v197
    %v202 = vmul.f32 %v134, %v171
    %v203 = vmul.f32 %v135, %v181
    %v204 = vmul.f32 %v136, %v191
    %v205 = vmul.f32 %v137, %v201
    %v207 = vperm.slane %v108, 0
    %v209 = vmul.f32 %v202, %v207
    %v210 = vmul.f32 %v203, %v207
    %v211 = vmul.f32 %v204, %v207
    %v212 = vmul.f32 %v205, %v207
    %v214 = vperm.slane %v109, 0
    %v216 = vadd.f32 %v209, %v214
    %v217 = vadd.f32 %v210, %v214
    %v218 = vadd.f32 %v211, %v214
    %v219 = vadd.f32 %v212, %v214
    %v220 = vpack.c.bf16 %v217, %v216
    %v221 = vpack.c.bf16 %v219, %v218
    %v222 = vld [vmem:[%s7] sm:$0xff]
    %v223 = vld [vmem:[%s7 + $0x8] sm:$0xff]
    %v224 = vld [vmem:[%s7 + $0x10] sm:$0xff]
    %v225 = vld [vmem:[%s7 + $0x18] sm:$0xff]
    %v226 = vld [vmem:[%s7 + $0x20] sm:$0xff]
    %v227 = vld [vmem:[%s7 + $0x28] sm:$0xff]
    %v228 = vld [vmem:[%s7 + $0x30] sm:$0xff]
    %v229 = vld [vmem:[%s7 + $0x38] sm:$0xff]
    %v230 = vld [vmem:[%s7 + $0x40] sm:$0xff]
    %v231 = vld [vmem:[%s7 + $0x48] sm:$0xff]
    %v232 = vld [vmem:[%s7 + $0x50] sm:$0xff]
    %v233 = vld [vmem:[%s7 + $0x58] sm:$0xff]
    %v234 = vld [vmem:[%s7 + $0x60] sm:$0xff]
    %v235 = vld [vmem:[%s7 + $0x68] sm:$0xff]
    %v236 = vld [vmem:[%s7 + $0x70] sm:$0xff]
    %v237 = vld [vmem:[%s7 + $0x78] sm:$0xff]
    %v238 = vpack.c.bf16 %v224, %v222
    %v239 = vpack.c.bf16 %v225, %v223
    %v240 = vpack.c.bf16 %v228, %v226
    %v241 = vpack.c.bf16 %v229, %v227
    %v242 = vpack.c.bf16 %v232, %v230
    %v243 = vpack.c.bf16 %v233, %v231
    %v244 = vpack.c.bf16 %v236, %v234
    %v245 = vpack.c.bf16 %v237, %v235
    %v246 = vld [vmem:[%s8] sm:$0x3]
    %v248 = vperm.slane %v246, 0
    %v249 = vperm.slane %v246, 1
    %v253 = vsel %vm110, %v220, 0
    %v256 = vsel %vm110, %v221, 0
    %258 = vmatpush.bf16.msra.mxu0 0
    %259 = vmatpush.bf16.msra.mxu0 0
    %260 = vmatpush.bf16.msra.mxu0 0
    %261 = vmatpush.bf16.msra.mxu0 0
    %262 = vmatpush.bf16.msra.mxu0 %v244
    %263 = vmatpush.bf16.msra.mxu0 %v242
    %264 = vmatpush.bf16.msra.mxu0 %v240
    %265 = vmatpush.bf16.msra.mxu0 %v238
    %266 = vmatmul.bf16.gmra.mxu0 %v253
    %v267 = vpop.f32.mrf.mxu0
    %v268 = vadd.f32 %v248, %v267
    %v269 = vpop.f32.mrf.mxu0
    %v270 = vadd.f32 %v248, %v269
    %271 = vmatmul.bf16.gmra.mxu0 %v256
    %v272 = vpop.f32.mrf.mxu0
    %v273 = vadd.f32 %v248, %v272
    %v274 = vpop.f32.mrf.mxu0
    %v275 = vadd.f32 %v248, %v274
    %276 = vdwg.mxu0
    %277 = vmatpush.bf16.msra.mxu0 0
    %278 = vmatpush.bf16.msra.mxu0 0
    %279 = vmatpush.bf16.msra.mxu0 0
    %280 = vmatpush.bf16.msra.mxu0 0
    %281 = vmatpush.bf16.msra.mxu0 %v245
    %282 = vmatpush.bf16.msra.mxu0 %v243
    %283 = vmatpush.bf16.msra.mxu0 %v241
    %284 = vmatpush.bf16.msra.mxu0 %v239
    %285 = vmatmul.bf16.gmra.mxu0 %v253
    %v286 = vpop.f32.mrf.mxu0
    %v287 = vadd.f32 %v249, %v286
    %v288 = vpop.f32.mrf.mxu0
    %v289 = vadd.f32 %v249, %v288
    %290 = vmatmul.bf16.gmra.mxu0 %v256
    %v291 = vpop.f32.mrf.mxu0
    %v292 = vadd.f32 %v249, %v291
    %v293 = vpop.f32.mrf.mxu0
    %v294 = vadd.f32 %v249, %v293
    %295 = vdwg.mxu0
    %v296 = vlaneseq
    %v297 = vshrl.u32 %v296, 7
    %v298 = vadd.s32 %v297, 8
    %v299 = vlaneseq
    %v300 = vand.u32 %v299, 127
    %vm301 = vcmp.le.s32.totalorder %v300, %v297
    %vm302 = vcmp.le.s32.totalorder %v300, %v298
    %v303 = vld [vmem:[%s9] sm:$0xff]
    %v304 = vld [vmem:[%s9 + $0x8] sm:$0xff]
    %v305 = vld [vmem:[%s9 + $0x10] sm:$0xff]
    %v306 = vld [vmem:[%s9 + $0x18] sm:$0xff]
    %v307 = vld [vmem:[%s9 + $0x20] sm:$0xff]
    %v308 = vld [vmem:[%s9 + $0x28] sm:$0xff]
    %v309 = vld [vmem:[%s9 + $0x30] sm:$0xff]
    %v310 = vld [vmem:[%s9 + $0x38] sm:$0xff]
    %v311 = vpack.c.bf16 %v303, %v303
    %v312 = vpack.c.bf16 %v304, %v304
    %v313 = vpack.c.bf16 %v305, %v305
    %v314 = vpack.c.bf16 %v306, %v306
    %v315 = vpack.c.bf16 %v307, %v307
    %v316 = vpack.c.bf16 %v308, %v308
    %v317 = vpack.c.bf16 %v309, %v309
    %v318 = vpack.c.bf16 %v310, %v310
    %v319 = vpack.c.bf16 %v268, %v268
    %v320 = vpack.c.bf16 %v270, %v270
    %v321 = vpack.c.bf16 %v273, %v273
    %v322 = vpack.c.bf16 %v275, %v275
    %v323 = vpack.c.bf16 %v287, %v287
    %v324 = vpack.c.bf16 %v289, %v289
    %v325 = vpack.c.bf16 %v292, %v292
    %v326 = vpack.c.bf16 %v294, %v294
    %v329 = vunpack.c.l.b16 %v319
    %v330 = vunpack.c.l.b16 %v320
    %v331 = vpack.c.b16 %v330, %v329
    %332 = vrot.lane.b32.xlu0 %v331, 64
    %v333 = vpop.permute.xlu0 %332
    %v335 = vsel %vm79, %v331, 0
    %v338 = vsel %vm79, %v333, 0
    %340 = vmatpush.bf16.xpose.msra.mxu0 0
    %341 = vmatpush.bf16.xpose.msra.mxu0 0
    %342 = vmatpush.bf16.xpose.msra.mxu0 0
    %343 = vmatpush.bf16.xpose.msra.mxu0 0
    %344 = vmatpush.bf16.xpose.msra.mxu0 0
    %345 = vmatpush.bf16.xpose.msra.mxu0 0
    %346 = vmatpush.bf16.xpose.msra.mxu0 0
    %347 = vmatpush.bf16.xpose.msra.mxu0 %v338
    %348 = vmatmul.bf16.gmra.mxu0 %v335
    %v349 = vpop.f32.mrf.mxu0
    %v350 = vadd.f32 0.0, %v349
    %v351 = vpop.f32.mrf.mxu0
    %v352 = vadd.f32 0.0, %v351
    %353 = vdwg.mxu0
    %v356 = vunpack.c.l.b16 %v321
    %v357 = vunpack.c.l.b16 %v322
    %v358 = vpack.c.b16 %v357, %v356
    %359 = vrot.lane.b32.xlu0 %v358, 64
    %v360 = vpop.permute.xlu0 %359
    %v362 = vsel %vm79, %v358, 0
    %v365 = vsel %vm79, %v360, 0
    %367 = vmatpush.bf16.xpose.msra.mxu0 0
    %368 = vmatpush.bf16.xpose.msra.mxu0 0
    %369 = vmatpush.bf16.xpose.msra.mxu0 0
    %370 = vmatpush.bf16.xpose.msra.mxu0 0
    %371 = vmatpush.bf16.xpose.msra.mxu0 0
    %372 = vmatpush.bf16.xpose.msra.mxu0 0
    %373 = vmatpush.bf16.xpose.msra.mxu0 0
    %374 = vmatpush.bf16.xpose.msra.mxu0 %v365
    %375 = vmatmul.bf16.gmra.mxu0 %v362
    %v376 = vpop.f32.mrf.mxu0
    %v377 = vadd.f32 0.0, %v376
    %v378 = vpop.f32.mrf.mxu0
    %v379 = vadd.f32 0.0, %v378
    %380 = vdwg.mxu0
    %v381 = vmul.f32 %v350, 0.25
    %v382 = vmul.f32 %v352, 0.25
    %v383 = vmul.f32 %v377, 0.25
    %v384 = vmul.f32 %v379, 0.25
    %v385 = vsel %vm301, 1, 0
    %v386 = vsel %vm302, 1, 0
    %vm387 = vcmp.eq.s32.totalorder %v385, 1
    %vm388 = vcmp.eq.s32.totalorder %v386, 1
    %v389 = vsel %vm387, %v381, -1e+30
    %v390 = vsel %vm388, %v382, -1e+30
    %v391 = vsel %vm387, %v383, -1e+30
    %v392 = vsel %vm388, %v384, -1e+30
    %v393 = vsel %vm79, %v389, -inf
    %394 = vmax.xlane.f32.xlu0 %v393
    %v395 = vpop.xlane.xlu0 %394
    %v396 = vsel %vm79, %v390, -inf
    %397 = vmax.xlane.f32.xlu0 %v396
    %v398 = vpop.xlane.xlu0 %397
    %v399 = vsel %vm79, %v391, -inf
    %400 = vmax.xlane.f32.xlu0 %v399
    %v401 = vpop.xlane.xlu0 %400
    %v402 = vsel %vm79, %v392, -inf
    %403 = vmax.xlane.f32.xlu0 %v402
    %v404 = vpop.xlane.xlu0 %403
    %v405 = vsub.f32 %v389, %v395
    %v406 = vsub.f32 %v390, %v398
    %v407 = vsub.f32 %v391, %v401
    %v408 = vsub.f32 %v392, %v404
    %v409 = vmul.f32 %v405, 1.442695
    %v410 = vpow.pop %v409
    %v411 = vmul.f32 %v406, 1.442695
    %v412 = vpow.pop %v411
    %v413 = vmul.f32 %v407, 1.442695
    %v414 = vpow.pop %v413
    %v415 = vmul.f32 %v408, 1.442695
    %v416 = vpow.pop %v415
    %v417 = vsel %vm79, %v410, 0.0
    %418 = vadd.xlane.f32.xlu0 %v417
    %v419 = vpop.xlane.xlu0 %418
    %v420 = vsel %vm79, %v412, 0.0
    %421 = vadd.xlane.f32.xlu0 %v420
    %v422 = vpop.xlane.xlu0 %421
    %v423 = vsel %vm79, %v414, 0.0
    %424 = vadd.xlane.f32.xlu0 %v423
    %v425 = vpop.xlane.xlu0 %424
    %v426 = vsel %vm79, %v416, 0.0
    %427 = vadd.xlane.f32.xlu0 %v426
    %v428 = vpop.xlane.xlu0 %427
    %v429 = vrcp.pop %v419
    %v430 = vrcp.pop %v422
    %v431 = vrcp.pop %v425
    %v432 = vrcp.pop %v428
    %v433 = vmul.f32 %v410, %v429
    %v434 = vmul.f32 %v412, %v430
    %v435 = vmul.f32 %v414, %v431
    %v436 = vmul.f32 %v416, %v432
    %v437 = vpack.c.bf16 %v433, %v433
    %v438 = vpack.c.bf16 %v434, %v434
    %v439 = vpack.c.bf16 %v435, %v435
    %v440 = vpack.c.bf16 %v436, %v436
    %v443 = vunpack.c.l.b16 %v437
    %v444 = vunpack.c.l.b16 %v438
    %v445 = vpack.c.b16 %v444, %v443
    %v448 = vunpack.c.l.b16 %v323
    %v449 = vunpack.c.l.b16 %v324
    %v450 = vpack.c.b16 %v449, %v448
    %v453 = vsel %vm79, %v445, 0
    %455 = vmatpush.bf16.msra.mxu0 0
    %456 = vmatpush.bf16.msra.mxu0 0
    %457 = vmatpush.bf16.msra.mxu0 0
    %458 = vmatpush.bf16.msra.mxu0 0
    %459 = vmatpush.bf16.msra.mxu0 0
    %460 = vmatpush.bf16.msra.mxu0 0
    %461 = vmatpush.bf16.msra.mxu0 0
    %462 = vmatpush.bf16.msra.mxu0 %v450
    %463 = vmatmul.bf16.gmra.mxu0 %v453
    %v464 = vpop.f32.mrf.mxu0
    %v465 = vadd.f32 0.0, %v464
    %v466 = vpop.f32.mrf.mxu0
    %v467 = vadd.f32 0.0, %v466
    %468 = vdwg.mxu0
    %v471 = vunpack.c.l.b16 %v439
    %v472 = vunpack.c.l.b16 %v440
    %v473 = vpack.c.b16 %v472, %v471
    %v476 = vunpack.c.l.b16 %v325
    %v477 = vunpack.c.l.b16 %v326
    %v478 = vpack.c.b16 %v477, %v476
    %v481 = vsel %vm79, %v473, 0
    %483 = vmatpush.bf16.msra.mxu0 0
    %484 = vmatpush.bf16.msra.mxu0 0
    %485 = vmatpush.bf16.msra.mxu0 0
    %486 = vmatpush.bf16.msra.mxu0 0
    %487 = vmatpush.bf16.msra.mxu0 0
    %488 = vmatpush.bf16.msra.mxu0 0
    %489 = vmatpush.bf16.msra.mxu0 0
    %490 = vmatpush.bf16.msra.mxu0 %v478
    %491 = vmatmul.bf16.gmra.mxu0 %v481
    %v492 = vpop.f32.mrf.mxu0
    %v493 = vadd.f32 0.0, %v492
    %v494 = vpop.f32.mrf.mxu0
    %v495 = vadd.f32 0.0, %v494
    %496 = vdwg.mxu0
    %v497 = vpack.c.bf16 %v467, %v465
    %v498 = vpack.c.bf16 %v495, %v493
    %499 = vrot.lane.b32.xlu0 %v331, 112
    %v500 = vpop.permute.xlu0 %499
    %501 = vrot.lane.b32.xlu0 %v331, 48
    %v502 = vpop.permute.xlu0 %501
    %v504 = vsel %vm79, %v500, 0
    %v507 = vsel %vm79, %v502, 0
    %509 = vmatpush.bf16.xpose.msra.mxu0 0
    %510 = vmatpush.bf16.xpose.msra.mxu0 0
    %511 = vmatpush.bf16.xpose.msra.mxu0 0
    %512 = vmatpush.bf16.xpose.msra.mxu0 0
    %513 = vmatpush.bf16.xpose.msra.mxu0 0
    %514 = vmatpush.bf16.xpose.msra.mxu0 0
    %515 = vmatpush.bf16.xpose.msra.mxu0 0
    %516 = vmatpush.bf16.xpose.msra.mxu0 %v507
    %517 = vmatmul.bf16.gmra.mxu0 %v504
    %v518 = vpop.f32.mrf.mxu0
    %v519 = vadd.f32 0.0, %v518
    %v520 = vpop.f32.mrf.mxu0
    %v521 = vadd.f32 0.0, %v520
    %522 = vdwg.mxu0
    %523 = vrot.lane.b32.xlu0 %v358, 112
    %v524 = vpop.permute.xlu0 %523
    %525 = vrot.lane.b32.xlu0 %v358, 48
    %v526 = vpop.permute.xlu0 %525
    %v528 = vsel %vm79, %v524, 0
    %v531 = vsel %vm79, %v526, 0
    %533 = vmatpush.bf16.xpose.msra.mxu0 0
    %534 = vmatpush.bf16.xpose.msra.mxu0 0
    %535 = vmatpush.bf16.xpose.msra.mxu0 0
    %536 = vmatpush.bf16.xpose.msra.mxu0 0
    %537 = vmatpush.bf16.xpose.msra.mxu0 0
    %538 = vmatpush.bf16.xpose.msra.mxu0 0
    %539 = vmatpush.bf16.xpose.msra.mxu0 0
    %540 = vmatpush.bf16.xpose.msra.mxu0 %v531
    %541 = vmatmul.bf16.gmra.mxu0 %v528
    %v542 = vpop.f32.mrf.mxu0
    %v543 = vadd.f32 0.0, %v542
    %v544 = vpop.f32.mrf.mxu0
    %v545 = vadd.f32 0.0, %v544
    %546 = vdwg.mxu0
    %v547 = vmul.f32 %v519, 0.25
    %v548 = vmul.f32 %v521, 0.25
    %v549 = vmul.f32 %v543, 0.25
    %v550 = vmul.f32 %v545, 0.25
    %v551 = vsel %vm387, %v547, -1e+30
    %v552 = vsel %vm388, %v548, -1e+30
    %v553 = vsel %vm387, %v549, -1e+30
    %v554 = vsel %vm388, %v550, -1e+30
    %v555 = vsel %vm79, %v551, -inf
    %556 = vmax.xlane.f32.xlu0 %v555
    %v557 = vpop.xlane.xlu0 %556
    %v558 = vsel %vm79, %v552, -inf
    %559 = vmax.xlane.f32.xlu0 %v558
    %v560 = vpop.xlane.xlu0 %559
    %v561 = vsel %vm79, %v553, -inf
    %562 = vmax.xlane.f32.xlu0 %v561
    %v563 = vpop.xlane.xlu0 %562
    %v564 = vsel %vm79, %v554, -inf
    %565 = vmax.xlane.f32.xlu0 %v564
    %v566 = vpop.xlane.xlu0 %565
    %v567 = vsub.f32 %v551, %v557
    %v568 = vsub.f32 %v552, %v560
    %v569 = vsub.f32 %v553, %v563
    %v570 = vsub.f32 %v554, %v566
    %v571 = vmul.f32 %v567, 1.442695
    %v572 = vpow.pop %v571
    %v573 = vmul.f32 %v568, 1.442695
    %v574 = vpow.pop %v573
    %v575 = vmul.f32 %v569, 1.442695
    %v576 = vpow.pop %v575
    %v577 = vmul.f32 %v570, 1.442695
    %v578 = vpow.pop %v577
    %v579 = vsel %vm79, %v572, 0.0
    %580 = vadd.xlane.f32.xlu0 %v579
    %v581 = vpop.xlane.xlu0 %580
    %v582 = vsel %vm79, %v574, 0.0
    %583 = vadd.xlane.f32.xlu0 %v582
    %v584 = vpop.xlane.xlu0 %583
    %v585 = vsel %vm79, %v576, 0.0
    %586 = vadd.xlane.f32.xlu0 %v585
    %v587 = vpop.xlane.xlu0 %586
    %v588 = vsel %vm79, %v578, 0.0
    %589 = vadd.xlane.f32.xlu0 %v588
    %v590 = vpop.xlane.xlu0 %589
    %v591 = vrcp.pop %v581
    %v592 = vrcp.pop %v584
    %v593 = vrcp.pop %v587
    %v594 = vrcp.pop %v590
    %v595 = vmul.f32 %v572, %v591
    %v596 = vmul.f32 %v574, %v592
    %v597 = vmul.f32 %v576, %v593
    %v598 = vmul.f32 %v578, %v594
    %v599 = vpack.c.bf16 %v595, %v595
    %v600 = vpack.c.bf16 %v596, %v596
    %v601 = vpack.c.bf16 %v597, %v597
    %v602 = vpack.c.bf16 %v598, %v598
    %v605 = vunpack.c.l.b16 %v599
    %v606 = vunpack.c.l.b16 %v600
    %v607 = vpack.c.b16 %v606, %v605
    %608 = vrot.lane.b32.xlu0 %v450, 112
    %v609 = vpop.permute.xlu0 %608
    %v612 = vsel %vm79, %v607, 0
    %614 = vmatpush.bf16.msra.mxu0 0
    %615 = vmatpush.bf16.msra.mxu0 0
    %616 = vmatpush.bf16.msra.mxu0 0
    %617 = vmatpush.bf16.msra.mxu0 0
    %618 = vmatpush.bf16.msra.mxu0 0
    %619 = vmatpush.bf16.msra.mxu0 0
    %620 = vmatpush.bf16.msra.mxu0 0
    %621 = vmatpush.bf16.msra.mxu0 %v609
    %622 = vmatmul.bf16.gmra.mxu0 %v612
    %v623 = vpop.f32.mrf.mxu0
    %v624 = vadd.f32 0.0, %v623
    %v625 = vpop.f32.mrf.mxu0
    %v626 = vadd.f32 0.0, %v625
    %627 = vdwg.mxu0
    %v630 = vunpack.c.l.b16 %v601
    %v631 = vunpack.c.l.b16 %v602
    %v632 = vpack.c.b16 %v631, %v630
    %633 = vrot.lane.b32.xlu0 %v478, 112
    %v634 = vpop.permute.xlu0 %633
    %v637 = vsel %vm79, %v632, 0
    %639 = vmatpush.bf16.msra.mxu0 0
    %640 = vmatpush.bf16.msra.mxu0 0
    %641 = vmatpush.bf16.msra.mxu0 0
    %642 = vmatpush.bf16.msra.mxu0 0
    %643 = vmatpush.bf16.msra.mxu0 0
    %644 = vmatpush.bf16.msra.mxu0 0
    %645 = vmatpush.bf16.msra.mxu0 0
    %646 = vmatpush.bf16.msra.mxu0 %v634
    %647 = vmatmul.bf16.gmra.mxu0 %v637
    %v648 = vpop.f32.mrf.mxu0
    %v649 = vadd.f32 0.0, %v648
    %v650 = vpop.f32.mrf.mxu0
    %v651 = vadd.f32 0.0, %v650
    %652 = vdwg.mxu0
    %v653 = vpack.c.bf16 %v626, %v624
    %v654 = vpack.c.bf16 %v651, %v649
    %v657 = vunpack.c.l.b16 %v313
    %v658 = vunpack.c.l.b16 %v314
    %v659 = vpack.c.b16 %v658, %v657
    %v662 = vsel %vm79, %v653, 0
    %v665 = vsel %vm79, %v654, 0
    %667 = vmatpush.bf16.msra.mxu0 0
    %668 = vmatpush.bf16.msra.mxu0 0
    %669 = vmatpush.bf16.msra.mxu0 0
    %670 = vmatpush.bf16.msra.mxu0 0
    %671 = vmatpush.bf16.msra.mxu0 0
    %672 = vmatpush.bf16.msra.mxu0 0
    %673 = vmatpush.bf16.msra.mxu0 0
    %674 = vmatpush.bf16.msra.mxu0 %v659
    %675 = vmatmul.bf16.gmra.mxu0 %v662
    %v676 = vpop.f32.mrf.mxu0
    %v677 = vadd.f32 0.0, %v676
    %v678 = vpop.f32.mrf.mxu0
    %v679 = vadd.f32 0.0, %v678
    %680 = vmatmul.bf16.gmra.mxu0 %v665
    %v681 = vpop.f32.mrf.mxu0
    %v682 = vadd.f32 0.0, %v681
    %v683 = vpop.f32.mrf.mxu0
    %v684 = vadd.f32 0.0, %v683
    %685 = vdwg.mxu0
    %v688 = vunpack.c.l.b16 %v311
    %v689 = vunpack.c.l.b16 %v312
    %v690 = vpack.c.b16 %v689, %v688
    %v693 = vsel %vm79, %v497, 0
    %v696 = vsel %vm79, %v498, 0
    %698 = vmatpush.bf16.msra.mxu0 0
    %699 = vmatpush.bf16.msra.mxu0 0
    %700 = vmatpush.bf16.msra.mxu0 0
    %701 = vmatpush.bf16.msra.mxu0 0
    %702 = vmatpush.bf16.msra.mxu0 0
    %703 = vmatpush.bf16.msra.mxu0 0
    %704 = vmatpush.bf16.msra.mxu0 0
    %705 = vmatpush.bf16.msra.mxu0 %v690
    %706 = vmatmul.bf16.gmra.mxu0 %v693
    %v707 = vpop.f32.mrf.mxu0
    %v708 = vadd.f32 %v677, %v707
    %v709 = vpop.f32.mrf.mxu0
    %v710 = vadd.f32 %v679, %v709
    %711 = vmatmul.bf16.gmra.mxu0 %v696
    %v712 = vpop.f32.mrf.mxu0
    %v713 = vadd.f32 %v682, %v712
    %v714 = vpop.f32.mrf.mxu0
    %v715 = vadd.f32 %v684, %v714
    %716 = vdwg.mxu0
    %717 = vrot.lane.b32.xlu0 %v331, 96
    %v718 = vpop.permute.xlu0 %717
    %719 = vrot.lane.b32.xlu0 %v331, 32
    %v720 = vpop.permute.xlu0 %719
    %v722 = vsel %vm79, %v718, 0
    %v725 = vsel %vm79, %v720, 0
    %727 = vmatpush.bf16.xpose.msra.mxu0 0
    %728 = vmatpush.bf16.xpose.msra.mxu0 0
    %729 = vmatpush.bf16.xpose.msra.mxu0 0
    %730 = vmatpush.bf16.xpose.msra.mxu0 0
    %731 = vmatpush.bf16.xpose.msra.mxu0 0
    %732 = vmatpush.bf16.xpose.msra.mxu0 0
    %733 = vmatpush.bf16.xpose.msra.mxu0 0
    %734 = vmatpush.bf16.xpose.msra.mxu0 %v725
    %735 = vmatmul.bf16.gmra.mxu0 %v722
    %v736 = vpop.f32.mrf.mxu0
    %v737 = vadd.f32 0.0, %v736
    %v738 = vpop.f32.mrf.mxu0
    %v739 = vadd.f32 0.0, %v738
    %740 = vdwg.mxu0
    %741 = vrot.lane.b32.xlu0 %v358, 96
    %v742 = vpop.permute.xlu0 %741
    %743 = vrot.lane.b32.xlu0 %v358, 32
    %v744 = vpop.permute.xlu0 %743
    %v746 = vsel %vm79, %v742, 0
    %v749 = vsel %vm79, %v744, 0
    %751 = vmatpush.bf16.xpose.msra.mxu0 0
    %752 = vmatpush.bf16.xpose.msra.mxu0 0
    %753 = vmatpush.bf16.xpose.msra.mxu0 0
    %754 = vmatpush.bf16.xpose.msra.mxu0 0
    %755 = vmatpush.bf16.xpose.msra.mxu0 0
    %756 = vmatpush.bf16.xpose.msra.mxu0 0
    %757 = vmatpush.bf16.xpose.msra.mxu0 0
    %758 = vmatpush.bf16.xpose.msra.mxu0 %v749
    %759 = vmatmul.bf16.gmra.mxu0 %v746
    %v760 = vpop.f32.mrf.mxu0
    %v761 = vadd.f32 0.0, %v760
    %v762 = vpop.f32.mrf.mxu0
    %v763 = vadd.f32 0.0, %v762
    %764 = vdwg.mxu0
    %v765 = vmul.f32 %v737, 0.25
    %v766 = vmul.f32 %v739, 0.25
    %v767 = vmul.f32 %v761, 0.25
    %v768 = vmul.f32 %v763, 0.25
    %v769 = vsel %vm387, %v765, -1e+30
    %v770 = vsel %vm388, %v766, -1e+30
    %v771 = vsel %vm387, %v767, -1e+30
    %v772 = vsel %vm388, %v768, -1e+30
    %v773 = vsel %vm79, %v769, -inf
    %774 = vmax.xlane.f32.xlu0 %v773
    %v775 = vpop.xlane.xlu0 %774
    %v776 = vsel %vm79, %v770, -inf
    %777 = vmax.xlane.f32.xlu0 %v776
    %v778 = vpop.xlane.xlu0 %777
    %v779 = vsel %vm79, %v771, -inf
    %780 = vmax.xlane.f32.xlu0 %v779
    %v781 = vpop.xlane.xlu0 %780
    %v782 = vsel %vm79, %v772, -inf
    %783 = vmax.xlane.f32.xlu0 %v782
    %v784 = vpop.xlane.xlu0 %783
    %v785 = vsub.f32 %v769, %v775
    %v786 = vsub.f32 %v770, %v778
    %v787 = vsub.f32 %v771, %v781
    %v788 = vsub.f32 %v772, %v784
    %v789 = vmul.f32 %v785, 1.442695
    %v790 = vpow.pop %v789
    %v791 = vmul.f32 %v786, 1.442695
    %v792 = vpow.pop %v791
    %v793 = vmul.f32 %v787, 1.442695
    %v794 = vpow.pop %v793
    %v795 = vmul.f32 %v788, 1.442695
    %v796 = vpow.pop %v795
    %v797 = vsel %vm79, %v790, 0.0
    %798 = vadd.xlane.f32.xlu0 %v797
    %v799 = vpop.xlane.xlu0 %798
    %v800 = vsel %vm79, %v792, 0.0
    %801 = vadd.xlane.f32.xlu0 %v800
    %v802 = vpop.xlane.xlu0 %801
    %v803 = vsel %vm79, %v794, 0.0
    %804 = vadd.xlane.f32.xlu0 %v803
    %v805 = vpop.xlane.xlu0 %804
    %v806 = vsel %vm79, %v796, 0.0
    %807 = vadd.xlane.f32.xlu0 %v806
    %v808 = vpop.xlane.xlu0 %807
    %v809 = vrcp.pop %v799
    %v810 = vrcp.pop %v802
    %v811 = vrcp.pop %v805
    %v812 = vrcp.pop %v808
    %v813 = vmul.f32 %v790, %v809
    %v814 = vmul.f32 %v792, %v810
    %v815 = vmul.f32 %v794, %v811
    %v816 = vmul.f32 %v796, %v812
    %v817 = vpack.c.bf16 %v813, %v813
    %v818 = vpack.c.bf16 %v814, %v814
    %v819 = vpack.c.bf16 %v815, %v815
    %v820 = vpack.c.bf16 %v816, %v816
    %v823 = vunpack.c.l.b16 %v817
    %v824 = vunpack.c.l.b16 %v818
    %v825 = vpack.c.b16 %v824, %v823
    %826 = vrot.lane.b32.xlu0 %v450, 96
    %v827 = vpop.permute.xlu0 %826
    %v830 = vsel %vm79, %v825, 0
    %832 = vmatpush.bf16.msra.mxu0 0
    %833 = vmatpush.bf16.msra.mxu0 0
    %834 = vmatpush.bf16.msra.mxu0 0
    %835 = vmatpush.bf16.msra.mxu0 0
    %836 = vmatpush.bf16.msra.mxu0 0
    %837 = vmatpush.bf16.msra.mxu0 0
    %838 = vmatpush.bf16.msra.mxu0 0
    %839 = vmatpush.bf16.msra.mxu0 %v827
    %840 = vmatmul.bf16.gmra.mxu0 %v830
    %v841 = vpop.f32.mrf.mxu0
    %v842 = vadd.f32 0.0, %v841
    %v843 = vpop.f32.mrf.mxu0
    %v844 = vadd.f32 0.0, %v843
    %845 = vdwg.mxu0
    %v848 = vunpack.c.l.b16 %v819
    %v849 = vunpack.c.l.b16 %v820
    %v850 = vpack.c.b16 %v849, %v848
    %851 = vrot.lane.b32.xlu0 %v478, 96
    %v852 = vpop.permute.xlu0 %851
    %v855 = vsel %vm79, %v850, 0
    %857 = vmatpush.bf16.msra.mxu0 0
    %858 = vmatpush.bf16.msra.mxu0 0
    %859 = vmatpush.bf16.msra.mxu0 0
    %860 = vmatpush.bf16.msra.mxu0 0
    %861 = vmatpush.bf16.msra.mxu0 0
    %862 = vmatpush.bf16.msra.mxu0 0
    %863 = vmatpush.bf16.msra.mxu0 0
    %864 = vmatpush.bf16.msra.mxu0 %v852
    %865 = vmatmul.bf16.gmra.mxu0 %v855
    %v866 = vpop.f32.mrf.mxu0
    %v867 = vadd.f32 0.0, %v866
    %v868 = vpop.f32.mrf.mxu0
    %v869 = vadd.f32 0.0, %v868
    %870 = vdwg.mxu0
    %v871 = vpack.c.bf16 %v844, %v842
    %v872 = vpack.c.bf16 %v869, %v867
    %v875 = vunpack.c.l.b16 %v315
    %v876 = vunpack.c.l.b16 %v316
    %v877 = vpack.c.b16 %v876, %v875
    %v880 = vsel %vm79, %v871, 0
    %v883 = vsel %vm79, %v872, 0
    %885 = vmatpush.bf16.msra.mxu0 0
    %886 = vmatpush.bf16.msra.mxu0 0
    %887 = vmatpush.bf16.msra.mxu0 0
    %888 = vmatpush.bf16.msra.mxu0 0
    %889 = vmatpush.bf16.msra.mxu0 0
    %890 = vmatpush.bf16.msra.mxu0 0
    %891 = vmatpush.bf16.msra.mxu0 0
    %892 = vmatpush.bf16.msra.mxu0 %v877
    %893 = vmatmul.bf16.gmra.mxu0 %v880
    %v894 = vpop.f32.mrf.mxu0
    %v895 = vadd.f32 0.0, %v894
    %v896 = vpop.f32.mrf.mxu0
    %v897 = vadd.f32 0.0, %v896
    %898 = vmatmul.bf16.gmra.mxu0 %v883
    %v899 = vpop.f32.mrf.mxu0
    %v900 = vadd.f32 0.0, %v899
    %v901 = vpop.f32.mrf.mxu0
    %v902 = vadd.f32 0.0, %v901
    %903 = vdwg.mxu0
    %v904 = vadd.f32 %v708, %v895
    %v905 = vadd.f32 %v710, %v897
    %v906 = vadd.f32 %v713, %v900
    %v907 = vadd.f32 %v715, %v902
    %908 = vrot.lane.b32.xlu0 %v331, 80
    %v909 = vpop.permute.xlu0 %908
    %910 = vrot.lane.b32.xlu0 %v331, 16
    %v911 = vpop.permute.xlu0 %910
    %v913 = vsel %vm79, %v909, 0
    %v916 = vsel %vm79, %v911, 0
    %918 = vmatpush.bf16.xpose.msra.mxu0 0
    %919 = vmatpush.bf16.xpose.msra.mxu0 0
    %920 = vmatpush.bf16.xpose.msra.mxu0 0
    %921 = vmatpush.bf16.xpose.msra.mxu0 0
    %922 = vmatpush.bf16.xpose.msra.mxu0 0
    %923 = vmatpush.bf16.xpose.msra.mxu0 0
    %924 = vmatpush.bf16.xpose.msra.mxu0 0
    %925 = vmatpush.bf16.xpose.msra.mxu0 %v916
    %926 = vmatmul.bf16.gmra.mxu0 %v913
    %v927 = vpop.f32.mrf.mxu0
    %v928 = vadd.f32 0.0, %v927
    %v929 = vpop.f32.mrf.mxu0
    %v930 = vadd.f32 0.0, %v929
    %931 = vdwg.mxu0
    %932 = vrot.lane.b32.xlu0 %v358, 80
    %v933 = vpop.permute.xlu0 %932
    %934 = vrot.lane.b32.xlu0 %v358, 16
    %v935 = vpop.permute.xlu0 %934
    %v937 = vsel %vm79, %v933, 0
    %v940 = vsel %vm79, %v935, 0
    %942 = vmatpush.bf16.xpose.msra.mxu0 0
    %943 = vmatpush.bf16.xpose.msra.mxu0 0
    %944 = vmatpush.bf16.xpose.msra.mxu0 0
    %945 = vmatpush.bf16.xpose.msra.mxu0 0
    %946 = vmatpush.bf16.xpose.msra.mxu0 0
    %947 = vmatpush.bf16.xpose.msra.mxu0 0
    %948 = vmatpush.bf16.xpose.msra.mxu0 0
    %949 = vmatpush.bf16.xpose.msra.mxu0 %v940
    %950 = vmatmul.bf16.gmra.mxu0 %v937
    %v951 = vpop.f32.mrf.mxu0
    %v952 = vadd.f32 0.0, %v951
    %v953 = vpop.f32.mrf.mxu0
    %v954 = vadd.f32 0.0, %v953
    %955 = vdwg.mxu0
    %v956 = vmul.f32 %v928, 0.25
    %v957 = vmul.f32 %v930, 0.25
    %v958 = vmul.f32 %v952, 0.25
    %v959 = vmul.f32 %v954, 0.25
    %v960 = vsel %vm387, %v956, -1e+30
    %v961 = vsel %vm388, %v957, -1e+30
    %v962 = vsel %vm387, %v958, -1e+30
    %v963 = vsel %vm388, %v959, -1e+30
    %v964 = vsel %vm79, %v960, -inf
    %965 = vmax.xlane.f32.xlu0 %v964
    %v966 = vpop.xlane.xlu0 %965
    %v967 = vsel %vm79, %v961, -inf
    %968 = vmax.xlane.f32.xlu0 %v967
    %v969 = vpop.xlane.xlu0 %968
    %v970 = vsel %vm79, %v962, -inf
    %971 = vmax.xlane.f32.xlu0 %v970
    %v972 = vpop.xlane.xlu0 %971
    %v973 = vsel %vm79, %v963, -inf
    %974 = vmax.xlane.f32.xlu0 %v973
    %v975 = vpop.xlane.xlu0 %974
    %v976 = vsub.f32 %v960, %v966
    %v977 = vsub.f32 %v961, %v969
    %v978 = vsub.f32 %v962, %v972
    %v979 = vsub.f32 %v963, %v975
    %v980 = vmul.f32 %v976, 1.442695
    %v981 = vpow.pop %v980
    %v982 = vmul.f32 %v977, 1.442695
    %v983 = vpow.pop %v982
    %v984 = vmul.f32 %v978, 1.442695
    %v985 = vpow.pop %v984
    %v986 = vmul.f32 %v979, 1.442695
    %v987 = vpow.pop %v986
    %v988 = vsel %vm79, %v981, 0.0
    %989 = vadd.xlane.f32.xlu0 %v988
    %v990 = vpop.xlane.xlu0 %989
    %v991 = vsel %vm79, %v983, 0.0
    %992 = vadd.xlane.f32.xlu0 %v991
    %v993 = vpop.xlane.xlu0 %992
    %v994 = vsel %vm79, %v985, 0.0
    %995 = vadd.xlane.f32.xlu0 %v994
    %v996 = vpop.xlane.xlu0 %995
    %v997 = vsel %vm79, %v987, 0.0
    %998 = vadd.xlane.f32.xlu0 %v997
    %v999 = vpop.xlane.xlu0 %998
    %v1000 = vrcp.pop %v990
    %v1001 = vrcp.pop %v993
    %v1002 = vrcp.pop %v996
    %v1003 = vrcp.pop %v999
    %v1004 = vmul.f32 %v981, %v1000
    %v1005 = vmul.f32 %v983, %v1001
    %v1006 = vmul.f32 %v985, %v1002
    %v1007 = vmul.f32 %v987, %v1003
    %v1008 = vpack.c.bf16 %v1004, %v1004
    %v1009 = vpack.c.bf16 %v1005, %v1005
    %v1010 = vpack.c.bf16 %v1006, %v1006
    %v1011 = vpack.c.bf16 %v1007, %v1007
    %v1014 = vunpack.c.l.b16 %v1008
    %v1015 = vunpack.c.l.b16 %v1009
    %v1016 = vpack.c.b16 %v1015, %v1014
    %1017 = vrot.lane.b32.xlu0 %v450, 80
    %v1018 = vpop.permute.xlu0 %1017
    %v1021 = vsel %vm79, %v1016, 0
    %1023 = vmatpush.bf16.msra.mxu0 0
    %1024 = vmatpush.bf16.msra.mxu0 0
    %1025 = vmatpush.bf16.msra.mxu0 0
    %1026 = vmatpush.bf16.msra.mxu0 0
    %1027 = vmatpush.bf16.msra.mxu0 0
    %1028 = vmatpush.bf16.msra.mxu0 0
    %1029 = vmatpush.bf16.msra.mxu0 0
    %1030 = vmatpush.bf16.msra.mxu0 %v1018
    %1031 = vmatmul.bf16.gmra.mxu0 %v1021
    %v1032 = vpop.f32.mrf.mxu0
    %v1033 = vadd.f32 0.0, %v1032
    %v1034 = vpop.f32.mrf.mxu0
    %v1035 = vadd.f32 0.0, %v1034
    %1036 = vdwg.mxu0
    %v1039 = vunpack.c.l.b16 %v1010
    %v1040 = vunpack.c.l.b16 %v1011
    %v1041 = vpack.c.b16 %v1040, %v1039
    %1042 = vrot.lane.b32.xlu0 %v478, 80
    %v1043 = vpop.permute.xlu0 %1042
    %v1046 = vsel %vm79, %v1041, 0
    %1048 = vmatpush.bf16.msra.mxu0 0
    %1049 = vmatpush.bf16.msra.mxu0 0
    %1050 = vmatpush.bf16.msra.mxu0 0
    %1051 = vmatpush.bf16.msra.mxu0 0
    %1052 = vmatpush.bf16.msra.mxu0 0
    %1053 = vmatpush.bf16.msra.mxu0 0
    %1054 = vmatpush.bf16.msra.mxu0 0
    %1055 = vmatpush.bf16.msra.mxu0 %v1043
    %1056 = vmatmul.bf16.gmra.mxu0 %v1046
    %v1057 = vpop.f32.mrf.mxu0
    %v1058 = vadd.f32 0.0, %v1057
    %v1059 = vpop.f32.mrf.mxu0
    %v1060 = vadd.f32 0.0, %v1059
    %1061 = vdwg.mxu0
    %v1062 = vpack.c.bf16 %v1035, %v1033
    %v1063 = vpack.c.bf16 %v1060, %v1058
    %v1066 = vunpack.c.l.b16 %v317
    %v1067 = vunpack.c.l.b16 %v318
    %v1068 = vpack.c.b16 %v1067, %v1066
    %v1071 = vsel %vm79, %v1062, 0
    %v1074 = vsel %vm79, %v1063, 0
    %1076 = vmatpush.bf16.msra.mxu0 0
    %1077 = vmatpush.bf16.msra.mxu0 0
    %1078 = vmatpush.bf16.msra.mxu0 0
    %1079 = vmatpush.bf16.msra.mxu0 0
    %1080 = vmatpush.bf16.msra.mxu0 0
    %1081 = vmatpush.bf16.msra.mxu0 0
    %1082 = vmatpush.bf16.msra.mxu0 0
    %1083 = vmatpush.bf16.msra.mxu0 %v1068
    %1084 = vmatmul.bf16.gmra.mxu0 %v1071
    %v1085 = vpop.f32.mrf.mxu0
    %v1086 = vadd.f32 0.0, %v1085
    %v1087 = vpop.f32.mrf.mxu0
    %v1088 = vadd.f32 0.0, %v1087
    %1089 = vmatmul.bf16.gmra.mxu0 %v1074
    %v1090 = vpop.f32.mrf.mxu0
    %v1091 = vadd.f32 0.0, %v1090
    %v1092 = vpop.f32.mrf.mxu0
    %v1093 = vadd.f32 0.0, %v1092
    %1094 = vdwg.mxu0
    %v1095 = vadd.f32 %v904, %v1086
    %v1096 = vadd.f32 %v905, %v1088
    %v1097 = vadd.f32 %v906, %v1091
    %v1098 = vadd.f32 %v907, %v1093
    %v1099 = vadd.f32 %v104, %v1095
    %v1100 = vadd.f32 %v105, %v1096
    %v1101 = vadd.f32 %v106, %v1097
    %v1102 = vadd.f32 %v107, %v1098
    %v1103 = vld [vmem:[%s10] sm:$0x1]
    %v1105 = vperm.slane %v1103, 0
    %v1107 = vadd.f32 %v1099, %v1105
    %v1108 = vadd.f32 %v1100, %v1105
    %v1109 = vadd.f32 %v1101, %v1105
    %v1110 = vadd.f32 %v1102, %v1105
    %v1111 = vld [vmem:[%s11] sm:$0x1]
    %v1112 = vld [vmem:[%s12] sm:$0x1]
    %v1113 = vsel %vm110, %v1107, 0.0
    %1114 = vadd.xlane.f32.xlu0 %v1113
    %v1115 = vpop.xlane.xlu0 %1114
    %v1116 = vsel %vm110, %v1108, 0.0
    %1117 = vadd.xlane.f32.xlu0 %v1116
    %v1118 = vpop.xlane.xlu0 %1117
    %v1119 = vsel %vm110, %v1109, 0.0
    %1120 = vadd.xlane.f32.xlu0 %v1119
    %v1121 = vpop.xlane.xlu0 %1120
    %v1122 = vsel %vm110, %v1110, 0.0
    %1123 = vadd.xlane.f32.xlu0 %v1122
    %v1124 = vpop.xlane.xlu0 %1123
    %v1125 = vmul.f32 %v1115, %v129
    %v1126 = vmul.f32 %v1118, %v129
    %v1127 = vmul.f32 %v1121, %v129
    %v1128 = vmul.f32 %v1124, %v129
    %v1129 = vsub.f32 %v1107, %v1125
    %v1130 = vsub.f32 %v1108, %v1126
    %v1131 = vsub.f32 %v1109, %v1127
    %v1132 = vsub.f32 %v1110, %v1128
    %v1133 = vmul.f32 %v1129, %v1129
    %v1134 = vmul.f32 %v1130, %v1130
    %v1135 = vmul.f32 %v1131, %v1131
    %v1136 = vmul.f32 %v1132, %v1132
    %v1137 = vsel %vm110, %v1133, 0.0
    %1138 = vadd.xlane.f32.xlu0 %v1137
    %v1139 = vpop.xlane.xlu0 %1138
    %v1140 = vsel %vm110, %v1134, 0.0
    %1141 = vadd.xlane.f32.xlu0 %v1140
    %v1142 = vpop.xlane.xlu0 %1141
    %v1143 = vsel %vm110, %v1135, 0.0
    %1144 = vadd.xlane.f32.xlu0 %v1143
    %v1145 = vpop.xlane.xlu0 %1144
    %v1146 = vsel %vm110, %v1136, 0.0
    %1147 = vadd.xlane.f32.xlu0 %v1146
    %v1148 = vpop.xlane.xlu0 %1147
    %v1149 = vmul.f32 %v1139, %v129
    %v1150 = vmul.f32 %v1142, %v129
    %v1151 = vmul.f32 %v1145, %v129
    %v1152 = vmul.f32 %v1148, %v129
    %v1153 = vadd.f32 %v1149, 1e-05
    %v1154 = vadd.f32 %v1150, 1e-05
    %v1155 = vadd.f32 %v1151, 1e-05
    %v1156 = vadd.f32 %v1152, 1e-05
    %v1157 = vrsqrt.pop %v1153
    %v1158 = vmul.f32 %v1157, %v1153
    %v1159 = vmul.f32 %v1158, %v1157
    %v1160 = vmul.f32 0.5, %v1159
    %v1161 = vsub.f32 1.5, %v1160
    %v1162 = vmul.f32 %v1157, %v1161
    %vm1163 = vweird.f32 %v1153
    %vm1164 = vweird.f32 %v1157
    %vm1165 = vmor %vm1163, %vm1164
    %v1166 = vsel %vm1165, %v1157, %v1162
    %v1167 = vrsqrt.pop %v1154
    %v1168 = vmul.f32 %v1167, %v1154
    %v1169 = vmul.f32 %v1168, %v1167
    %v1170 = vmul.f32 0.5, %v1169
    %v1171 = vsub.f32 1.5, %v1170
    %v1172 = vmul.f32 %v1167, %v1171
    %vm1173 = vweird.f32 %v1154
    %vm1174 = vweird.f32 %v1167
    %vm1175 = vmor %vm1173, %vm1174
    %v1176 = vsel %vm1175, %v1167, %v1172
    %v1177 = vrsqrt.pop %v1155
    %v1178 = vmul.f32 %v1177, %v1155
    %v1179 = vmul.f32 %v1178, %v1177
    %v1180 = vmul.f32 0.5, %v1179
    %v1181 = vsub.f32 1.5, %v1180
    %v1182 = vmul.f32 %v1177, %v1181
    %vm1183 = vweird.f32 %v1155
    %vm1184 = vweird.f32 %v1177
    %vm1185 = vmor %vm1183, %vm1184
    %v1186 = vsel %vm1185, %v1177, %v1182
    %v1187 = vrsqrt.pop %v1156
    %v1188 = vmul.f32 %v1187, %v1156
    %v1189 = vmul.f32 %v1188, %v1187
    %v1190 = vmul.f32 0.5, %v1189
    %v1191 = vsub.f32 1.5, %v1190
    %v1192 = vmul.f32 %v1187, %v1191
    %vm1193 = vweird.f32 %v1156
    %vm1194 = vweird.f32 %v1187
    %vm1195 = vmor %vm1193, %vm1194
    %v1196 = vsel %vm1195, %v1187, %v1192
    %v1197 = vmul.f32 %v1129, %v1166
    %v1198 = vmul.f32 %v1130, %v1176
    %v1199 = vmul.f32 %v1131, %v1186
    %v1200 = vmul.f32 %v1132, %v1196
    %v1202 = vperm.slane %v1111, 0
    %v1204 = vmul.f32 %v1197, %v1202
    %v1205 = vmul.f32 %v1198, %v1202
    %v1206 = vmul.f32 %v1199, %v1202
    %v1207 = vmul.f32 %v1200, %v1202
    %v1209 = vperm.slane %v1112, 0
    %v1211 = vadd.f32 %v1204, %v1209
    %v1212 = vadd.f32 %v1205, %v1209
    %v1213 = vadd.f32 %v1206, %v1209
    %v1214 = vadd.f32 %v1207, %v1209
    %v1215 = vpack.c.bf16 %v1212, %v1211
    %v1216 = vpack.c.bf16 %v1214, %v1213
    %v1217 = vld [vmem:[%s13] sm:$0xff]
    %v1218 = vld [vmem:[%s13 + $0x8] sm:$0xff]
    %v1219 = vld [vmem:[%s13 + $0x10] sm:$0xff]
    %v1220 = vld [vmem:[%s13 + $0x18] sm:$0xff]
    %v1221 = vld [vmem:[%s13 + $0x20] sm:$0xff]
    %v1222 = vld [vmem:[%s13 + $0x28] sm:$0xff]
    %v1223 = vld [vmem:[%s13 + $0x30] sm:$0xff]
    %v1224 = vld [vmem:[%s13 + $0x38] sm:$0xff]
    %v1225 = vld [vmem:[%s13 + $0x40] sm:$0xff]
    %v1226 = vld [vmem:[%s13 + $0x48] sm:$0xff]
    %v1227 = vld [vmem:[%s13 + $0x50] sm:$0xff]
    %v1228 = vld [vmem:[%s13 + $0x58] sm:$0xff]
    %v1229 = vld [vmem:[%s13 + $0x60] sm:$0xff]
    %v1230 = vld [vmem:[%s13 + $0x68] sm:$0xff]
    %v1231 = vld [vmem:[%s13 + $0x70] sm:$0xff]
    %v1232 = vld [vmem:[%s13 + $0x78] sm:$0xff]
    %v1233 = vpack.c.bf16 %v1219, %v1217
    %v1234 = vpack.c.bf16 %v1220, %v1218
    %v1235 = vpack.c.bf16 %v1223, %v1221
    %v1236 = vpack.c.bf16 %v1224, %v1222
    %v1237 = vpack.c.bf16 %v1227, %v1225
    %v1238 = vpack.c.bf16 %v1228, %v1226
    %v1239 = vpack.c.bf16 %v1231, %v1229
    %v1240 = vpack.c.bf16 %v1232, %v1230
    %v1241 = vld [vmem:[%s14] sm:$0x3]
    %v1243 = vperm.slane %v1241, 0
    %v1244 = vperm.slane %v1241, 1
    %v1248 = vsel %vm110, %v1215, 0
    %v1251 = vsel %vm110, %v1216, 0
    %1253 = vmatpush.bf16.msra.mxu0 0
    %1254 = vmatpush.bf16.msra.mxu0 0
    %1255 = vmatpush.bf16.msra.mxu0 0
    %1256 = vmatpush.bf16.msra.mxu0 0
    %1257 = vmatpush.bf16.msra.mxu0 %v1239
    %1258 = vmatpush.bf16.msra.mxu0 %v1237
    %1259 = vmatpush.bf16.msra.mxu0 %v1235
    %1260 = vmatpush.bf16.msra.mxu0 %v1233
    %1261 = vmatmul.bf16.gmra.mxu0 %v1248
    %v1262 = vpop.f32.mrf.mxu0
    %v1263 = vadd.f32 %v1243, %v1262
    %v1264 = vpop.f32.mrf.mxu0
    %v1265 = vadd.f32 %v1243, %v1264
    %1266 = vmatmul.bf16.gmra.mxu0 %v1251
    %v1267 = vpop.f32.mrf.mxu0
    %v1268 = vadd.f32 %v1243, %v1267
    %v1269 = vpop.f32.mrf.mxu0
    %v1270 = vadd.f32 %v1243, %v1269
    %1271 = vdwg.mxu0
    %1272 = vmatpush.bf16.msra.mxu0 0
    %1273 = vmatpush.bf16.msra.mxu0 0
    %1274 = vmatpush.bf16.msra.mxu0 0
    %1275 = vmatpush.bf16.msra.mxu0 0
    %1276 = vmatpush.bf16.msra.mxu0 %v1240
    %1277 = vmatpush.bf16.msra.mxu0 %v1238
    %1278 = vmatpush.bf16.msra.mxu0 %v1236
    %1279 = vmatpush.bf16.msra.mxu0 %v1234
    %1280 = vmatmul.bf16.gmra.mxu0 %v1248
    %v1281 = vpop.f32.mrf.mxu0
    %v1282 = vadd.f32 %v1244, %v1281
    %v1283 = vpop.f32.mrf.mxu0
    %v1284 = vadd.f32 %v1244, %v1283
    %1285 = vmatmul.bf16.gmra.mxu0 %v1251
    %v1286 = vpop.f32.mrf.mxu0
    %v1287 = vadd.f32 %v1244, %v1286
    %v1288 = vpop.f32.mrf.mxu0
    %v1289 = vadd.f32 %v1244, %v1288
    %1290 = vdwg.mxu0
    %v1291 = vmul.f32 %v1263, 0.5
    %v1292 = vmul.f32 %v1282, 0.5
    %v1293 = vmul.f32 %v1265, 0.5
    %v1294 = vmul.f32 %v1284, 0.5
    %v1295 = vmul.f32 %v1268, 0.5
    %v1296 = vmul.f32 %v1287, 0.5
    %v1297 = vmul.f32 %v1270, 0.5
    %v1298 = vmul.f32 %v1289, 0.5
    %v1299 = vmul.f32 %v1263, 0.044715
    %v1300 = vmul.f32 %v1282, 0.044715
    %v1301 = vmul.f32 %v1265, 0.044715
    %v1302 = vmul.f32 %v1284, 0.044715
    %v1303 = vmul.f32 %v1268, 0.044715
    %v1304 = vmul.f32 %v1287, 0.044715
    %v1305 = vmul.f32 %v1270, 0.044715
    %v1306 = vmul.f32 %v1289, 0.044715
    %v1307 = vmul.f32 %v1299, %v1263
    %v1308 = vmul.f32 %v1300, %v1282
    %v1309 = vmul.f32 %v1301, %v1265
    %v1310 = vmul.f32 %v1302, %v1284
    %v1311 = vmul.f32 %v1303, %v1268
    %v1312 = vmul.f32 %v1304, %v1287
    %v1313 = vmul.f32 %v1305, %v1270
    %v1314 = vmul.f32 %v1306, %v1289
    %v1315 = vmul.f32 %v1307, %v1263
    %v1316 = vmul.f32 %v1308, %v1282
    %v1317 = vmul.f32 %v1309, %v1265
    %v1318 = vmul.f32 %v1310, %v1284
    %v1319 = vmul.f32 %v1311, %v1268
    %v1320 = vmul.f32 %v1312, %v1287
    %v1321 = vmul.f32 %v1313, %v1270
    %v1322 = vmul.f32 %v1314, %v1289
    %v1323 = vadd.f32 %v1263, %v1315
    %v1324 = vadd.f32 %v1282, %v1316
    %v1325 = vadd.f32 %v1265, %v1317
    %v1326 = vadd.f32 %v1284, %v1318
    %v1327 = vadd.f32 %v1268, %v1319
    %v1328 = vadd.f32 %v1287, %v1320
    %v1329 = vadd.f32 %v1270, %v1321
    %v1330 = vadd.f32 %v1289, %v1322
    %v1331 = vmul.f32 %v1323, 0.7978846
    %v1332 = vmul.f32 %v1324, 0.7978846
    %v1333 = vmul.f32 %v1325, 0.7978846
    %v1334 = vmul.f32 %v1326, 0.7978846
    %v1335 = vmul.f32 %v1327, 0.7978846
    %v1336 = vmul.f32 %v1328, 0.7978846
    %v1337 = vmul.f32 %v1329, 0.7978846
    %v1338 = vmul.f32 %v1330, 0.7978846
    %v1339 = vtanh.pop %v1331
    %v1340 = vtanh.pop %v1332
    %v1341 = vtanh.pop %v1333
    %v1342 = vtanh.pop %v1334
    %v1343 = vtanh.pop %v1335
    %v1344 = vtanh.pop %v1336
    %v1345 = vtanh.pop %v1337
    %v1346 = vtanh.pop %v1338
    %v1347 = vadd.f32 %v1339, 1.0
    %v1348 = vadd.f32 %v1340, 1.0
    %v1349 = vadd.f32 %v1341, 1.0
    %v1350 = vadd.f32 %v1342, 1.0
    %v1351 = vadd.f32 %v1343, 1.0
    %v1352 = vadd.f32 %v1344, 1.0
    %v1353 = vadd.f32 %v1345, 1.0
    %v1354 = vadd.f32 %v1346, 1.0
    %v1355 = vmul.f32 %v1291, %v1347
    %v1356 = vmul.f32 %v1292, %v1348
    %v1357 = vmul.f32 %v1293, %v1349
    %v1358 = vmul.f32 %v1294, %v1350
    %v1359 = vmul.f32 %v1295, %v1351
    %v1360 = vmul.f32 %v1296, %v1352
    %v1361 = vmul.f32 %v1297, %v1353
    %v1362 = vmul.f32 %v1298, %v1354
    %v1363 = vpack.c.bf16 %v1357, %v1355
    %v1364 = vpack.c.bf16 %v1358, %v1356
    %v1365 = vpack.c.bf16 %v1361, %v1359
    %v1366 = vpack.c.bf16 %v1362, %v1360
    %v1367 = vld [vmem:[%s15] sm:$0xff]
    %v1368 = vld [vmem:[%s15 + $0x8] sm:$0xff]
    %v1369 = vld [vmem:[%s15 + $0x10] sm:$0xff]
    %v1370 = vld [vmem:[%s15 + $0x18] sm:$0xff]
    %v1371 = vld [vmem:[%s15 + $0x20] sm:$0xff]
    %v1372 = vld [vmem:[%s15 + $0x28] sm:$0xff]
    %v1373 = vld [vmem:[%s15 + $0x30] sm:$0xff]
    %v1374 = vld [vmem:[%s15 + $0x38] sm:$0xff]
    %v1375 = vld [vmem:[%s15 + $0x40] sm:$0xff]
    %v1376 = vld [vmem:[%s15 + $0x48] sm:$0xff]
    %v1377 = vld [vmem:[%s15 + $0x50] sm:$0xff]
    %v1378 = vld [vmem:[%s15 + $0x58] sm:$0xff]
    %v1379 = vld [vmem:[%s15 + $0x60] sm:$0xff]
    %v1380 = vld [vmem:[%s15 + $0x68] sm:$0xff]
    %v1381 = vld [vmem:[%s15 + $0x70] sm:$0xff]
    %v1382 = vld [vmem:[%s15 + $0x78] sm:$0xff]
    %v1383 = vld [vmem:[%s15 + $0x80] sm:$0xff]
    %v1384 = vld [vmem:[%s15 + $0x88] sm:$0xff]
    %v1385 = vld [vmem:[%s15 + $0x90] sm:$0xff]
    %v1386 = vld [vmem:[%s15 + $0x98] sm:$0xff]
    %v1387 = vld [vmem:[%s15 + $0xa0] sm:$0xff]
    %v1388 = vld [vmem:[%s15 + $0xa8] sm:$0xff]
    %v1389 = vld [vmem:[%s15 + $0xb0] sm:$0xff]
    %v1390 = vld [vmem:[%s15 + $0xb8] sm:$0xff]
    %v1391 = vld [vmem:[%s15 + $0xc0] sm:$0xff]
    %v1392 = vld [vmem:[%s15 + $0xc8] sm:$0xff]
    %v1393 = vld [vmem:[%s15 + $0xd0] sm:$0xff]
    %v1394 = vld [vmem:[%s15 + $0xd8] sm:$0xff]
    %v1395 = vld [vmem:[%s15 + $0xe0] sm:$0xff]
    %v1396 = vld [vmem:[%s15 + $0xe8] sm:$0xff]
    %v1397 = vld [vmem:[%s15 + $0xf0] sm:$0xff]
    %v1398 = vld [vmem:[%s15 + $0xf8] sm:$0xff]
    %v1399 = vpack.c.bf16 %v1368, %v1367
    %v1400 = vpack.c.bf16 %v1370, %v1369
    %v1401 = vpack.c.bf16 %v1372, %v1371
    %v1402 = vpack.c.bf16 %v1374, %v1373
    %v1403 = vpack.c.bf16 %v1376, %v1375
    %v1404 = vpack.c.bf16 %v1378, %v1377
    %v1405 = vpack.c.bf16 %v1380, %v1379
    %v1406 = vpack.c.bf16 %v1382, %v1381
    %v1407 = vpack.c.bf16 %v1384, %v1383
    %v1408 = vpack.c.bf16 %v1386, %v1385
    %v1409 = vpack.c.bf16 %v1388, %v1387
    %v1410 = vpack.c.bf16 %v1390, %v1389
    %v1411 = vpack.c.bf16 %v1392, %v1391
    %v1412 = vpack.c.bf16 %v1394, %v1393
    %v1413 = vpack.c.bf16 %v1396, %v1395
    %v1414 = vpack.c.bf16 %v1398, %v1397
    %v1415 = vld [vmem:[%s16] sm:$0x1]
    %v1417 = vperm.slane %v1415, 0
    %1419 = vmatpush.bf16.msra.mxu0 %v1406
    %1420 = vmatpush.bf16.msra.mxu0 %v1405
    %1421 = vmatpush.bf16.msra.mxu0 %v1404
    %1422 = vmatpush.bf16.msra.mxu0 %v1403
    %1423 = vmatpush.bf16.msra.mxu0 %v1402
    %1424 = vmatpush.bf16.msra.mxu0 %v1401
    %1425 = vmatpush.bf16.msra.mxu0 %v1400
    %1426 = vmatpush.bf16.msra.mxu0 %v1399
    %1427 = vmatmul.bf16.gmra.mxu0 %v1363
    %v1428 = vpop.f32.mrf.mxu0
    %v1429 = vadd.f32 %v1417, %v1428
    %v1430 = vpop.f32.mrf.mxu0
    %v1431 = vadd.f32 %v1417, %v1430
    %1432 = vmatmul.bf16.gmra.mxu0 %v1365
    %v1433 = vpop.f32.mrf.mxu0
    %v1434 = vadd.f32 %v1417, %v1433
    %v1435 = vpop.f32.mrf.mxu0
    %v1436 = vadd.f32 %v1417, %v1435
    %1437 = vdwg.mxu0
    %1438 = vmatpush.bf16.msra.mxu0 %v1414
    %1439 = vmatpush.bf16.msra.mxu0 %v1413
    %1440 = vmatpush.bf16.msra.mxu0 %v1412
    %1441 = vmatpush.bf16.msra.mxu0 %v1411
    %1442 = vmatpush.bf16.msra.mxu0 %v1410
    %1443 = vmatpush.bf16.msra.mxu0 %v1409
    %1444 = vmatpush.bf16.msra.mxu0 %v1408
    %1445 = vmatpush.bf16.msra.mxu0 %v1407
    %1446 = vmatmul.bf16.gmra.mxu0 %v1364
    %v1447 = vpop.f32.mrf.mxu0
    %v1448 = vadd.f32 %v1429, %v1447
    %v1449 = vpop.f32.mrf.mxu0
    %v1450 = vadd.f32 %v1431, %v1449
    %1451 = vmatmul.bf16.gmra.mxu0 %v1366
    %v1452 = vpop.f32.mrf.mxu0
    %v1453 = vadd.f32 %v1434, %v1452
    %v1454 = vpop.f32.mrf.mxu0
    %v1455 = vadd.f32 %v1436, %v1454
    %1456 = vdwg.mxu0
    %v1457 = vadd.f32 %v1107, %v1448
    %v1458 = vadd.f32 %v1108, %v1450
    %v1459 = vadd.f32 %v1109, %v1453
    %v1460 = vadd.f32 %v1110, %v1455
    %v1461 = vld [vmem:[%s17] sm:$0x1]
    %v1462 = vld [vmem:[%s18] sm:$0x1]
    %v1463 = vsel %vm110, %v1457, 0.0
    %1464 = vadd.xlane.f32.xlu0 %v1463
    %v1465 = vpop.xlane.xlu0 %1464
    %v1466 = vsel %vm110, %v1458, 0.0
    %1467 = vadd.xlane.f32.xlu0 %v1466
    %v1468 = vpop.xlane.xlu0 %1467
    %v1469 = vsel %vm110, %v1459, 0.0
    %1470 = vadd.xlane.f32.xlu0 %v1469
    %v1471 = vpop.xlane.xlu0 %1470
    %v1472 = vsel %vm110, %v1460, 0.0
    %1473 = vadd.xlane.f32.xlu0 %v1472
    %v1474 = vpop.xlane.xlu0 %1473
    %v1475 = vmul.f32 %v1465, %v129
    %v1476 = vmul.f32 %v1468, %v129
    %v1477 = vmul.f32 %v1471, %v129
    %v1478 = vmul.f32 %v1474, %v129
    %v1479 = vsub.f32 %v1457, %v1475
    %v1480 = vsub.f32 %v1458, %v1476
    %v1481 = vsub.f32 %v1459, %v1477
    %v1482 = vsub.f32 %v1460, %v1478
    %v1483 = vmul.f32 %v1479, %v1479
    %v1484 = vmul.f32 %v1480, %v1480
    %v1485 = vmul.f32 %v1481, %v1481
    %v1486 = vmul.f32 %v1482, %v1482
    %v1487 = vsel %vm110, %v1483, 0.0
    %1488 = vadd.xlane.f32.xlu0 %v1487
    %v1489 = vpop.xlane.xlu0 %1488
    %v1490 = vsel %vm110, %v1484, 0.0
    %1491 = vadd.xlane.f32.xlu0 %v1490
    %v1492 = vpop.xlane.xlu0 %1491
    %v1493 = vsel %vm110, %v1485, 0.0
    %1494 = vadd.xlane.f32.xlu0 %v1493
    %v1495 = vpop.xlane.xlu0 %1494
    %v1496 = vsel %vm110, %v1486, 0.0
    %1497 = vadd.xlane.f32.xlu0 %v1496
    %v1498 = vpop.xlane.xlu0 %1497
    %v1499 = vmul.f32 %v1489, %v129
    %v1500 = vmul.f32 %v1492, %v129
    %v1501 = vmul.f32 %v1495, %v129
    %v1502 = vmul.f32 %v1498, %v129
    %v1503 = vadd.f32 %v1499, 1e-05
    %v1504 = vadd.f32 %v1500, 1e-05
    %v1505 = vadd.f32 %v1501, 1e-05
    %v1506 = vadd.f32 %v1502, 1e-05
    %v1507 = vrsqrt.pop %v1503
    %v1508 = vmul.f32 %v1507, %v1503
    %v1509 = vmul.f32 %v1508, %v1507
    %v1510 = vmul.f32 0.5, %v1509
    %v1511 = vsub.f32 1.5, %v1510
    %v1512 = vmul.f32 %v1507, %v1511
    %vm1513 = vweird.f32 %v1503
    %vm1514 = vweird.f32 %v1507
    %vm1515 = vmor %vm1513, %vm1514
    %v1516 = vsel %vm1515, %v1507, %v1512
    %v1517 = vrsqrt.pop %v1504
    %v1518 = vmul.f32 %v1517, %v1504
    %v1519 = vmul.f32 %v1518, %v1517
    %v1520 = vmul.f32 0.5, %v1519
    %v1521 = vsub.f32 1.5, %v1520
    %v1522 = vmul.f32 %v1517, %v1521
    %vm1523 = vweird.f32 %v1504
    %vm1524 = vweird.f32 %v1517
    %vm1525 = vmor %vm1523, %vm1524
    %v1526 = vsel %vm1525, %v1517, %v1522
    %v1527 = vrsqrt.pop %v1505
    %v1528 = vmul.f32 %v1527, %v1505
    %v1529 = vmul.f32 %v1528, %v1527
    %v1530 = vmul.f32 0.5, %v1529
    %v1531 = vsub.f32 1.5, %v1530
    %v1532 = vmul.f32 %v1527, %v1531
    %vm1533 = vweird.f32 %v1505
    %vm1534 = vweird.f32 %v1527
    %vm1535 = vmor %vm1533, %vm1534
    %v1536 = vsel %vm1535, %v1527, %v1532
    %v1537 = vrsqrt.pop %v1506
    %v1538 = vmul.f32 %v1537, %v1506
    %v1539 = vmul.f32 %v1538, %v1537
    %v1540 = vmul.f32 0.5, %v1539
    %v1541 = vsub.f32 1.5, %v1540
    %v1542 = vmul.f32 %v1537, %v1541
    %vm1543 = vweird.f32 %v1506
    %vm1544 = vweird.f32 %v1537
    %vm1545 = vmor %vm1543, %vm1544
    %v1546 = vsel %vm1545, %v1537, %v1542
    %v1547 = vmul.f32 %v1479, %v1516
    %v1548 = vmul.f32 %v1480, %v1526
    %v1549 = vmul.f32 %v1481, %v1536
    %v1550 = vmul.f32 %v1482, %v1546
    %v1552 = vperm.slane %v1461, 0
    %v1554 = vmul.f32 %v1547, %v1552
    %v1555 = vmul.f32 %v1548, %v1552
    %v1556 = vmul.f32 %v1549, %v1552
    %v1557 = vmul.f32 %v1550, %v1552
    %v1559 = vperm.slane %v1462, 0
    %v1561 = vadd.f32 %v1554, %v1559
    %v1562 = vadd.f32 %v1555, %v1559
    %v1563 = vadd.f32 %v1556, %v1559
    %v1564 = vadd.f32 %v1557, %v1559
    %v1565 = vld [vmem:[%s19] sm:$0x1]
    %v1567 = vperm.slane %v1565, 0
    %v1569 = vmul.f32 %v1561, %v1567
    %v1570 = vmul.f32 %v1562, %v1567
    %v1571 = vmul.f32 %v1563, %v1567
    %v1572 = vmul.f32 %v1564, %v1567
    %v1573 = vsel %vm110, %v1569, 0.0
    %1574 = vadd.xlane.f32.xlu0 %v1573
    %v1575 = vpop.xlane.xlu0 %1574
    %v1576 = vsel %vm110, %v1570, 0.0
    %1577 = vadd.xlane.f32.xlu0 %v1576
    %v1578 = vpop.xlane.xlu0 %1577
    %v1579 = vsel %vm110, %v1571, 0.0
    %1580 = vadd.xlane.f32.xlu0 %v1579
    %v1581 = vpop.xlane.xlu0 %1580
    %v1582 = vsel %vm110, %v1572, 0.0
    %1583 = vadd.xlane.f32.xlu0 %v1582
    %v1584 = vpop.xlane.xlu0 %1583
    %v1589 = vperm.slane %v1575, %v300
    %v1590 = vadd.s32 %v300, 4294967288
    %v1591 = vperm.slane %v1578, %v1590
    %vm1592 = vcmask 130112
    %v1593 = vsel %vm1592, %v1591, %v1589
    %v1594 = vperm.slane %v1581, %v300
    %v1595 = vperm.slane %v1584, %v1590
    %v1596 = vsel %vm1592, %v1595, %v1594
    %vm1597 = vcmask 1041409
    %v1598 = vsel %vm1597, %v1596, %v1593
    %vm1600 = vcmask 123904
    %1601 = vst.msk [vmem:[#allocation3] sm:$0x3] %vm1600, %v1598
    %v1602 = vld [vmem:[%s1] sm:$0x3]
    %v1604 = vperm.slane %v1602, 0
    %v1605 = vlaneseq
    %v1606 = vshrl.u32 %v1605, 7
    %1608 = vset.pattern.permute.xlu0 %v1606
    %1609 = vperm.xlu0 %1608, %v1604
    %v1610 = vpop.permute.xlu0 %1609
    %v1611 = vlaneseq
    %v1612 = vshrl.u32 %v1611, 7
    %v1613 = vadd.s32 %v1612, 8
    %1614 = vset.pattern.permute.xlu0 %v1613
    %1615 = vperm.xlu0 %1614, %v1604
    %v1616 = vpop.permute.xlu0 %1615
    %v1617 = vperm.slane %v1602, 1
    %v1618 = vlaneseq
    %v1619 = vshrl.u32 %v1618, 7
    %1621 = vset.pattern.permute.xlu0 %v1619
    %1622 = vperm.xlu0 %1621, %v1617
    %v1623 = vpop.permute.xlu0 %1622
    %v1624 = vlaneseq
    %v1625 = vshrl.u32 %v1624, 7
    %v1626 = vadd.s32 %v1625, 8
    %1627 = vset.pattern.permute.xlu0 %v1626
    %1628 = vperm.xlu0 %1627, %v1617
    %v1629 = vpop.permute.xlu0 %1628
    %v1634 = vsub.f32 %v1575, %v1610
    %v1635 = vsub.f32 %v1578, %v1616
    %v1636 = vsub.f32 %v1581, %v1623
    %v1637 = vsub.f32 %v1584, %v1629
    %v1638 = vmul.f32 %v1634, %v1634
    %v1639 = vmul.f32 %v1635, %v1635
    %v1640 = vmul.f32 %v1636, %v1636
    %v1641 = vmul.f32 %v1637, %v1637
    %1646 = vset.pattern.permute.xlu0 0
    %1647 = vperm.xlu0 %1646, %v1638
    %v1648 = vpop.permute.xlu0 %1647
    %1649 = vset.pattern.permute.xlu0 0
    %1650 = vperm.xlu0 %1649, %v1639
    %v1651 = vpop.permute.xlu0 %1650
    %1652 = vset.pattern.permute.xlu0 0
    %1653 = vperm.xlu0 %1652, %v1640
    %v1654 = vpop.permute.xlu0 %1653
    %1655 = vset.pattern.permute.xlu0 0
    %1656 = vperm.xlu0 %1655, %v1641
    %v1657 = vpop.permute.xlu0 %1656
    %v1658 = vperm.slane %v1648, %v300
    %v1659 = vperm.slane %v1651, %v1590
    %v1660 = vsel %vm1592, %v1659, %v1658
    %v1661 = vperm.slane %v1654, %v300
    %v1662 = vperm.slane %v1657, %v1590
    %v1663 = vsel %vm1592, %v1662, %v1661
    %v1664 = vsel %vm1597, %v1663, %v1660
    %v1666 = vsel %vm1600, %v1664, 0.0
    %1667 = vadd.xlane.f32.xlu0 %v1666
    %v1668 = vpop.xlane.xlu0 %1667
    %vm1669 = vcmask 1041408
    %v1670 = vsel %vm1669, %v1668, 0.0
    %v1671 = vrot.slane %v1670, 4
    %v1672 = vadd.f32 %v1670, %v1671
    %v1673 = vrot.slane %v1672, 2
    %v1674 = vadd.f32 %v1672, %v1673
    %v1675 = vrot.slane %v1674, 1
    %v1676 = vadd.f32 %v1674, %v1675
    %p1677 = scmp.eq.s32.totalorder 0, 0
    // Predicated region
    $region82: #{tpu_custom_call.1} parent=1 // pred_check
      %p1678 = pneg %p1677
    $region83: #{tpu_custom_call.1} parent=1 // pred_check_branch
      %1680 = sbr.rel (%p1678) target = $region85
    $region84: #{tpu_custom_call.1} parent=1 // pred_region
      %vm1681 = vcmask 0
      %1682 = vst.msk [vmem:[#allocation2] sm:$0x1] %vm1681, 0.0
    $region85: #{tpu_custom_call.1} parent=1 // pred_fallthru
      _
    %v1683 = vld [vmem:[#allocation2] sm:$0x1]
    %v1684 = vadd.f32 %v1683, %v1676
    %vm1685 = vcmask 0
    %1686 = vst.msk [vmem:[#allocation2] sm:$0x1] %vm1685, %v1684
    // Predicated region
    $region86: #{tpu_custom_call.1} parent=1 // pred_check
      %p1687 = pneg %p1677
    $region87: #{tpu_custom_call.1} parent=1 // pred_check_branch
      %1689 = sbr.rel (%p1687) target = $region89
    $region88: #{tpu_custom_call.1} parent=1 // pred_region
      %v1690 = vld [vmem:[#allocation2] sm:$0x1]
      %v1691 = vmul.f32 %v1690, 0.03125
      %1692 = vst.msk [vmem:[#allocation5] sm:$0x1] %vm1685, %v1691
    $region89: #{tpu_custom_call.1} parent=1 // pred_fallthru
      _
    // Predicated region
    $region90: #{tpu_custom_call.1} parent=1 // pred_check
      _
    $region91: #{tpu_custom_call.1} parent=1 // pred_check_branch
      %1694 = sbr.rel (0) target = $region93
    $region92: #{tpu_custom_call.1} parent=1 // pred_region
      %1696 = vsyncadd [#allocation4], 0
      %s1698 = sshll.u32 [#allocation3], 4
      %s1699 = int_to_ptr.vmem [resolvable:$true] %s1698
      %s1700 = sshll.u32 %s20, 4
      %s1701 = int_to_ptr.hbm [resolvable:$true] %s1700
      %1703 = dma.vmem_to_hbm [thread:$0]  %s1699, 32, %s1701, [#allocation4]
    $region93: #{tpu_custom_call.1} parent=1 // pred_fallthru
      _
    // Predicated region
    $region94: #{tpu_custom_call.1} parent=1 // pred_check
      _
    $region95: #{tpu_custom_call.1} parent=1 // pred_check_branch
      %1705 = sbr.rel (0) target = $region97
    $region96: #{tpu_custom_call.1} parent=1 // pred_region
      %1707 = vsyncadd [#allocation6], 0
      %s1709 = sshll.u32 [#allocation5], 4
      %s1710 = int_to_ptr.vmem [resolvable:$true] %s1709
      %s1711 = sshll.u32 %s21, 4
      %s1712 = int_to_ptr.hbm [resolvable:$true] %s1711
      %1714 = dma.vmem_to_hbm [thread:$0]  %s1710, 16, %s1712, [#allocation6]
    $region97: #{tpu_custom_call.1} parent=1 // pred_fallthru
      _
    // Predicated region
    $region98: #{tpu_custom_call.1} parent=1 // pred_check
      _
    $region99: #{tpu_custom_call.1} parent=1 // pred_check_branch
      %1716 = sbr.rel (0) target = $region101
    $region100: #{tpu_custom_call.1} parent=1 // pred_region
      %1718 = dma.done [#allocation4], 32
    $region101: #{tpu_custom_call.1} parent=1 // pred_fallthru
      _
    // Predicated region
    $region102: #{tpu_custom_call.1} parent=1 // pred_check
      _
    $region103: #{tpu_custom_call.1} parent=1 // pred_check_branch
      %1720 = sbr.rel (0) target = $region105
    $region104: #{tpu_custom_call.1} parent=1 // pred_region
      %1722 = dma.done [#allocation6], 16
    $region105: #{tpu_custom_call.1} parent=1 // pred_fallthru
      _
    %1723 = vsyncpa [#allocation4], 1
    %1724 = vsyncpa [#allocation6], 1

</llo_original>
